<compile_context>
chip_gen: v7x
topology: tpu7x:2x2x1
jax: 0.10.0
libtpu: 0.0.40
codegen_flags: <defaults>
</compile_context>

<pallas_src>
import math

import jax
import jax.numpy as jnp
from jax.experimental import pallas as pl
from jax.experimental.pallas import tpu as pltpu


def gru_gen2_kernel(x_ref,                    # (B, T)       raw scalar sequence
                    wi0_ref, b0_ref,          # (1, 3H), (1, 3H)  layer-0 input row / folded bias
                    whh0_ref, bhh0_ref,       # (H, 3H), (1, 3H)  layer-0 hidden weights / n-gate hh bias
                    w1_ref, b1_ref,           # (2H, 4H), (1, 4H) layer-1 fused weight / bias
                    wfc_ref, bfc_ref,         # (H, O_pad), (1, O_pad)
                    out_ref):                 # (B, O_pad)
    B, T = x_ref.shape
    H = whh0_ref.shape[0]

    # Hoist every load out of the (fully unrolled) recurrence.
    xs = x_ref[...]
    wi0 = wi0_ref[...]
    b0 = b0_ref[...]
    whh0 = whh0_ref[...]
    bhh0 = bhh0_ref[...]
    w1 = w1_ref[...]
    b1 = b1_ref[...]

    h0 = jnp.zeros((B, H), jnp.float32)
    h1 = jnp.zeros((B, H), jnp.float32)

    # T is a compile-time constant -> static Python unroll (identical to
    # fori_loop(..., unroll=True) at T=8) with static slice indices throughout.
    for t in range(T):
        # ---- layer 0: input proj is a VPU broadcast-multiply (scalar input) ----
        x_t = xs[:, t:t + 1]                                           # (B, 1)
        gi0 = x_t * wi0 + b0                                           # (B, 3H)
        gh0 = jnp.dot(h0, whh0, preferred_element_type=jnp.float32) + bhh0
        rz0 = jax.nn.sigmoid(gi0[:, :2 * H] + gh0[:, :2 * H])
        r0, z0 = rz0[:, :H], rz0[:, H:]
        n0 = jnp.tanh(gi0[:, 2 * H:] + r0 * gh0[:, 2 * H:])
        h0 = (1.0 - z0) * n0 + z0 * h0

        # ---- layer 1: one fused (2H,4H) dot; cols = [rz | gi_n | gh_n] ----
        h_cat = jnp.concatenate([h0, h1], axis=-1)                     # (B, 2H)
        g1 = jnp.dot(h_cat, w1, preferred_element_type=jnp.float32) + b1
        rz1 = jax.nn.sigmoid(g1[:, :2 * H])
        r1, z1 = rz1[:, :H], rz1[:, H:]
        n1 = jnp.tanh(g1[:, 2 * H:3 * H] + r1 * g1[:, 3 * H:])
        h1 = (1.0 - z1) * n1 + z1 * h1

    # ---- fc + tanh on the last layer's final hidden state (lane-dense O_pad) ----
    out_ref[...] = jnp.tanh(
        jnp.dot(h1, wfc_ref[...], preferred_element_type=jnp.float32)
        + bfc_ref[...]).astype(out_ref.dtype)


def _vmem_padded_bytes(a):
    """Bytes a (f32) tensor occupies once padded to the (8, 128) VMEM tiling."""
    s = a.shape
    if len(s) < 2:
        rows, cols, lead = 1, (s[0] if s else 1), 1
    else:
        lead = math.prod(s[:-2]) if len(s) > 2 else 1
        rows, cols = s[-2], s[-1]
    rows_p = -(-rows // 8) * 8
    cols_p = -(-cols // 128) * 128
    return lead * rows_p * cols_p * jnp.dtype(a.dtype).itemsize


def pack_params(params, *, hidden_dim, out_dim):
    """One-time weight packing (called at init, NOT on the per-call path)."""
    H, O = hidden_dim, out_dim

    # --- layer 0: input weight as a (1, 3H) row; r/z biases folded (b_ih+b_hh),
    #     n-gate keeps b_ih on the input side and b_hh inside the r*() term.
    wi0 = params["w_ih_l0"].reshape(1, 3 * H)
    b0 = jnp.concatenate(
        [params["b_ih_l0"][:2 * H] + params["b_hh_l0"][:2 * H],
         params["b_ih_l0"][2 * H:]]).reshape(1, 3 * H)
    whh0 = params["w_hh_l0"].T                                         # (H, 3H)
    bhh0 = jnp.concatenate(
        [jnp.zeros((2 * H,), jnp.float32),
         params["b_hh_l0"][2 * H:]]).reshape(1, 3 * H)

    # --- layer 1, single fused weight: g1 = [h0'|h1] @ w1 + b1 with columns
    #     [0:2H] = rz pre-activations, [2H:3H] = gi_n, [3H:4H] = gh_n.
    w_ih_l1_t = params["w_ih_l1"].T                                    # (H, 3H)
    w_hh_l1_t = params["w_hh_l1"].T                                    # (H, 3H)
    zeros_hh = jnp.zeros((H, H), jnp.float32)
    w1a = jnp.concatenate([w_ih_l1_t, zeros_hh], axis=1)               # (H, 4H)
    w1b = jnp.concatenate(
        [w_hh_l1_t[:, :2 * H], zeros_hh, w_hh_l1_t[:, 2 * H:]], axis=1)  # (H, 4H)
    w1 = jnp.concatenate([w1a, w1b], axis=0)                           # (2H, 4H)
    b1 = jnp.concatenate(
        [params["b_ih_l1"][:2 * H] + params["b_hh_l1"][:2 * H],
         params["b_ih_l1"][2 * H:], params["b_hh_l1"][2 * H:]]).reshape(1, 4 * H)

    # --- fc padded to a lane-dense output width (multiple of 128); crop later.
    O_pad = max(128, -(-O // 128) * 128)
    wfc = jnp.zeros((H, O_pad), jnp.float32).at[:, :O].set(params["fc_w"].T)
    bfc = jnp.zeros((1, O_pad), jnp.float32).at[:, :O].set(params["fc_b"][None, :])

    packed = {"wi0": wi0, "b0": b0, "whh0": whh0, "bhh0": bhh0,
              "w1": w1, "b1": b1, "wfc": wfc, "bfc": bfc}
    packed = {k: jax.block_until_ready(v) for k, v in packed.items()}
    packed["out_dim"] = O
    return packed


def generator2_forward(x, packed):
    """x: (B, in_dim) float32; packed: output of pack_params. Returns (B, out_dim)."""
    B, T = x.shape
    O = packed["out_dim"]
    O_pad = packed["wfc"].shape[1]

    args = (x, packed["wi0"], packed["b0"], packed["whh0"], packed["bhh0"],
            packed["w1"], packed["b1"], packed["wfc"], packed["bfc"])
    out_struct = jax.ShapeDtypeStruct((B, O_pad), jnp.float32)

    # Actual padded resident footprint + ~2 MiB headroom (no artificial floor).
    footprint = sum(_vmem_padded_bytes(a) for a in args) + _vmem_padded_bytes(out_struct)
    vmem_limit = int(footprint + (2 << 20))

    vmem = pl.BlockSpec(memory_space=pltpu.MemorySpace.VMEM)
    out_pad = pl.pallas_call(
        gru_gen2_kernel,
        out_shape=out_struct,
        in_specs=[vmem] * len(args),
        out_specs=vmem,
        compiler_params=pltpu.CompilerParams(vmem_limit_bytes=vmem_limit),
    )(*args)

    return out_pad[:, :O]


def ref_forward(x, p, H):
    """Pure-JAX reference mirroring torch.nn.GRU + Linear + Tanh."""
    B, T = x.shape
    h0 = jnp.zeros((B, H), jnp.float32)
    h1 = jnp.zeros((B, H), jnp.float32)

    def cell(xin, h, w_ih, w_hh, b_ih, b_hh):
        gi = xin @ w_ih.T + b_ih
        gh = h @ w_hh.T + b_hh
        r = jax.nn.sigmoid(gi[:, :H] + gh[:, :H])
        z = jax.nn.sigmoid(gi[:, H:2 * H] + gh[:, H:2 * H])
        n = jnp.tanh(gi[:, 2 * H:] + r * gh[:, 2 * H:])
        return (1.0 - z) * n + z * h

    for t in range(T):
        xt = x[:, t:t + 1]
        h0 = cell(xt, h0, p["w_ih_l0"], p["w_hh_l0"], p["b_ih_l0"], p["b_hh_l0"])
        h1 = cell(h0, h1, p["w_ih_l1"], p["w_hh_l1"], p["b_ih_l1"], p["b_hh_l1"])
    return jnp.tanh(h1 @ p["fc_w"].T + p["fc_b"])


def init_params(key, in_dim, hidden_dim, out_dim):
    H = hidden_dim
    k = 1.0 / jnp.sqrt(jnp.float32(H))
    names_shapes = [
        ("w_ih_l0", (3 * H, 1)), ("w_hh_l0", (3 * H, H)),
        ("b_ih_l0", (3 * H,)), ("b_hh_l0", (3 * H,)),
        ("w_ih_l1", (3 * H, H)), ("w_hh_l1", (3 * H, H)),
        ("b_ih_l1", (3 * H,)), ("b_hh_l1", (3 * H,)),
        ("fc_w", (out_dim, H)), ("fc_b", (out_dim,)),
    ]
    params = {}
    for name, shape in names_shapes:
        key, sub = jax.random.split(key)
        params[name] = jax.random.uniform(sub, shape, jnp.float32, -k, k)
    return params


if __name__ == "__main__":
    B, IN_DIM, HIDDEN, OUT_DIM = 2, 8, 32, 64

    key = jax.random.PRNGKey(0)
    key, kx = jax.random.split(key)
    x = jax.random.normal(kx, (B, IN_DIM), jnp.float32)
    params = init_params(key, IN_DIM, HIDDEN, OUT_DIM)

    packed = pack_params(params, hidden_dim=HIDDEN, out_dim=OUT_DIM)  # one-time init

    out = generator2_forward(x, packed)                               # per-call: x only
    out = jax.block_until_ready(out)

    expected = ref_forward(x, params, HIDDEN)
    assert out.shape == (B, OUT_DIM)
    assert jnp.allclose(out, expected, atol=2e-3, rtol=2e-3), "mismatch vs reference"
    print("KERNEL_OK")
</pallas_src>

<mosaic_0001>
module attributes {stable_mosaic.version = 11 : i64} {
  func.func @gru_gen2_kernel(%arg0: memref<2x8xf32, #tpu.memory_space<vmem>>, %arg1: memref<1x96xf32, #tpu.memory_space<vmem>>, %arg2: memref<1x96xf32, #tpu.memory_space<vmem>>, %arg3: memref<32x96xf32, #tpu.memory_space<vmem>>, %arg4: memref<1x96xf32, #tpu.memory_space<vmem>>, %arg5: memref<64x128xf32, #tpu.memory_space<vmem>>, %arg6: memref<1x128xf32, #tpu.memory_space<vmem>>, %arg7: memref<32x128xf32, #tpu.memory_space<vmem>>, %arg8: memref<1x128xf32, #tpu.memory_space<vmem>>, %arg9: memref<2x128xf32, #tpu.memory_space<vmem>>) attributes {dimension_semantics = [], scalar_prefetch = 0 : i64, scratch_operands = 0 : i64, tpu.core_type = #tpu.core_type<tc>} {
    %c0 = arith.constant 0 : index
    %c0_0 = arith.constant 0 : index
    %0 = vector.load %arg0[%c0, %c0_0] : memref<2x8xf32, #tpu.memory_space<vmem>>, vector<2x8xf32>
    %c0_1 = arith.constant 0 : index
    %c0_2 = arith.constant 0 : index
    %1 = vector.load %arg1[%c0_1, %c0_2] : memref<1x96xf32, #tpu.memory_space<vmem>>, vector<1x96xf32>
    %c0_3 = arith.constant 0 : index
    %c0_4 = arith.constant 0 : index
    %2 = vector.load %arg2[%c0_3, %c0_4] : memref<1x96xf32, #tpu.memory_space<vmem>>, vector<1x96xf32>
    %c0_5 = arith.constant 0 : index
    %c0_6 = arith.constant 0 : index
    %3 = vector.load %arg3[%c0_5, %c0_6] : memref<32x96xf32, #tpu.memory_space<vmem>>, vector<32x96xf32>
    %c0_7 = arith.constant 0 : index
    %c0_8 = arith.constant 0 : index
    %4 = vector.load %arg4[%c0_7, %c0_8] : memref<1x96xf32, #tpu.memory_space<vmem>>, vector<1x96xf32>
    %c0_9 = arith.constant 0 : index
    %c0_10 = arith.constant 0 : index
    %5 = vector.load %arg5[%c0_9, %c0_10] : memref<64x128xf32, #tpu.memory_space<vmem>>, vector<64x128xf32>
    %c0_11 = arith.constant 0 : index
    %c0_12 = arith.constant 0 : index
    %6 = vector.load %arg6[%c0_11, %c0_12] : memref<1x128xf32, #tpu.memory_space<vmem>>, vector<1x128xf32>
    %cst = arith.constant 0.000000e+00 : f32
    %7 = vector.broadcast %cst : f32 to vector<2x32xf32>
    %cst_13 = arith.constant 0.000000e+00 : f32
    %8 = vector.broadcast %cst_13 : f32 to vector<2x32xf32>
    %9 = vector.extract_strided_slice %0 {offsets = [0, 0], sizes = [2, 1], strides = [1, 1]} : vector<2x8xf32> to vector<2x1xf32>
    %10 = vector.broadcast %9 : vector<2x1xf32> to vector<2x96xf32>
    %11 = vector.broadcast %1 : vector<1x96xf32> to vector<2x96xf32>
    %12 = arith.mulf %10, %11 : vector<2x96xf32>
    %13 = vector.broadcast %2 : vector<1x96xf32> to vector<2x96xf32>
    %14 = arith.addf %12, %13 : vector<2x96xf32>
    %cst_14 = arith.constant dense<0.000000e+00> : vector<2x96xf32>
    %15 = tpu.matmul %7, %3, %cst_14 {dimension_numbers = #tpu.dot_dimension_numbers<[1], [0], [0], [1], [0, 0, 1, 1], [], []>} : vector<2x32xf32>, vector<32x96xf32>, vector<2x96xf32> -> vector<2x96xf32>
    %16 = vector.broadcast %4 : vector<1x96xf32> to vector<2x96xf32>
    %17 = arith.addf %15, %16 : vector<2x96xf32>
    %18 = vector.extract_strided_slice %14 {offsets = [0, 0], sizes = [2, 64], strides = [1, 1]} : vector<2x96xf32> to vector<2x64xf32>
    %19 = vector.extract_strided_slice %17 {offsets = [0, 0], sizes = [2, 64], strides = [1, 1]} : vector<2x96xf32> to vector<2x64xf32>
    %20 = arith.addf %18, %19 : vector<2x64xf32>
    %21 = arith.negf %20 : vector<2x64xf32>
    %22 = math.exp %21 : vector<2x64xf32>
    %cst_15 = arith.constant 1.000000e+00 : f32
    %23 = vector.broadcast %cst_15 : f32 to vector<2x64xf32>
    %24 = arith.addf %23, %22 : vector<2x64xf32>
    %25 = arith.divf %23, %24 : vector<2x64xf32>
    %26 = vector.extract_strided_slice %25 {offsets = [0, 0], sizes = [2, 32], strides = [1, 1]} : vector<2x64xf32> to vector<2x32xf32>
    %27 = vector.extract_strided_slice %25 {offsets = [0, 32], sizes = [2, 32], strides = [1, 1]} : vector<2x64xf32> to vector<2x32xf32>
    %28 = vector.extract_strided_slice %14 {offsets = [0, 64], sizes = [2, 32], strides = [1, 1]} : vector<2x96xf32> to vector<2x32xf32>
    %29 = vector.extract_strided_slice %17 {offsets = [0, 64], sizes = [2, 32], strides = [1, 1]} : vector<2x96xf32> to vector<2x32xf32>
    %30 = arith.mulf %26, %29 : vector<2x32xf32>
    %31 = arith.addf %28, %30 : vector<2x32xf32>
    %32 = math.tanh %31 : vector<2x32xf32>
    %cst_16 = arith.constant 1.000000e+00 : f32
    %33 = vector.broadcast %cst_16 : f32 to vector<2x32xf32>
    %34 = arith.subf %33, %27 : vector<2x32xf32>
    %35 = arith.mulf %34, %32 : vector<2x32xf32>
    %36 = arith.mulf %27, %7 : vector<2x32xf32>
    %37 = arith.addf %35, %36 : vector<2x32xf32>
    %38 = tpu.concatenate %37, %8 in 1 : vector<2x32xf32>, vector<2x32xf32> -> vector<2x64xf32>
    %cst_17 = arith.constant dense<0.000000e+00> : vector<2x128xf32>
    %39 = tpu.matmul %38, %5, %cst_17 {dimension_numbers = #tpu.dot_dimension_numbers<[1], [0], [0], [1], [0, 0, 1, 1], [], []>} : vector<2x64xf32>, vector<64x128xf32>, vector<2x128xf32> -> vector<2x128xf32>
    %40 = vector.broadcast %6 : vector<1x128xf32> to vector<2x128xf32>
    %41 = arith.addf %39, %40 : vector<2x128xf32>
    %42 = vector.extract_strided_slice %41 {offsets = [0, 0], sizes = [2, 64], strides = [1, 1]} : vector<2x128xf32> to vector<2x64xf32>
    %43 = arith.negf %42 : vector<2x64xf32>
    %44 = math.exp %43 : vector<2x64xf32>
    %cst_18 = arith.constant 1.000000e+00 : f32
    %45 = vector.broadcast %cst_18 : f32 to vector<2x64xf32>
    %46 = arith.addf %45, %44 : vector<2x64xf32>
    %47 = arith.divf %45, %46 : vector<2x64xf32>
    %48 = vector.extract_strided_slice %47 {offsets = [0, 0], sizes = [2, 32], strides = [1, 1]} : vector<2x64xf32> to vector<2x32xf32>
    %49 = vector.extract_strided_slice %47 {offsets = [0, 32], sizes = [2, 32], strides = [1, 1]} : vector<2x64xf32> to vector<2x32xf32>
    %50 = vector.extract_strided_slice %41 {offsets = [0, 64], sizes = [2, 32], strides = [1, 1]} : vector<2x128xf32> to vector<2x32xf32>
    %51 = vector.extract_strided_slice %41 {offsets = [0, 96], sizes = [2, 32], strides = [1, 1]} : vector<2x128xf32> to vector<2x32xf32>
    %52 = arith.mulf %48, %51 : vector<2x32xf32>
    %53 = arith.addf %50, %52 : vector<2x32xf32>
    %54 = math.tanh %53 : vector<2x32xf32>
    %cst_19 = arith.constant 1.000000e+00 : f32
    %55 = vector.broadcast %cst_19 : f32 to vector<2x32xf32>
    %56 = arith.subf %55, %49 : vector<2x32xf32>
    %57 = arith.mulf %56, %54 : vector<2x32xf32>
    %58 = arith.mulf %49, %8 : vector<2x32xf32>
    %59 = arith.addf %57, %58 : vector<2x32xf32>
    %60 = vector.extract_strided_slice %0 {offsets = [0, 1], sizes = [2, 1], strides = [1, 1]} : vector<2x8xf32> to vector<2x1xf32>
    %61 = vector.broadcast %60 : vector<2x1xf32> to vector<2x96xf32>
    %62 = vector.broadcast %1 : vector<1x96xf32> to vector<2x96xf32>
    %63 = arith.mulf %61, %62 : vector<2x96xf32>
    %64 = vector.broadcast %2 : vector<1x96xf32> to vector<2x96xf32>
    %65 = arith.addf %63, %64 : vector<2x96xf32>
    %cst_20 = arith.constant dense<0.000000e+00> : vector<2x96xf32>
    %66 = tpu.matmul %37, %3, %cst_20 {dimension_numbers = #tpu.dot_dimension_numbers<[1], [0], [0], [1], [0, 0, 1, 1], [], []>} : vector<2x32xf32>, vector<32x96xf32>, vector<2x96xf32> -> vector<2x96xf32>
    %67 = vector.broadcast %4 : vector<1x96xf32> to vector<2x96xf32>
    %68 = arith.addf %66, %67 : vector<2x96xf32>
    %69 = vector.extract_strided_slice %65 {offsets = [0, 0], sizes = [2, 64], strides = [1, 1]} : vector<2x96xf32> to vector<2x64xf32>
    %70 = vector.extract_strided_slice %68 {offsets = [0, 0], sizes = [2, 64], strides = [1, 1]} : vector<2x96xf32> to vector<2x64xf32>
    %71 = arith.addf %69, %70 : vector<2x64xf32>
    %72 = arith.negf %71 : vector<2x64xf32>
    %73 = math.exp %72 : vector<2x64xf32>
    %cst_21 = arith.constant 1.000000e+00 : f32
    %74 = vector.broadcast %cst_21 : f32 to vector<2x64xf32>
    %75 = arith.addf %74, %73 : vector<2x64xf32>
    %76 = arith.divf %74, %75 : vector<2x64xf32>
    %77 = vector.extract_strided_slice %76 {offsets = [0, 0], sizes = [2, 32], strides = [1, 1]} : vector<2x64xf32> to vector<2x32xf32>
    %78 = vector.extract_strided_slice %76 {offsets = [0, 32], sizes = [2, 32], strides = [1, 1]} : vector<2x64xf32> to vector<2x32xf32>
    %79 = vector.extract_strided_slice %65 {offsets = [0, 64], sizes = [2, 32], strides = [1, 1]} : vector<2x96xf32> to vector<2x32xf32>
    %80 = vector.extract_strided_slice %68 {offsets = [0, 64], sizes = [2, 32], strides = [1, 1]} : vector<2x96xf32> to vector<2x32xf32>
    %81 = arith.mulf %77, %80 : vector<2x32xf32>
    %82 = arith.addf %79, %81 : vector<2x32xf32>
    %83 = math.tanh %82 : vector<2x32xf32>
    %cst_22 = arith.constant 1.000000e+00 : f32
    %84 = vector.broadcast %cst_22 : f32 to vector<2x32xf32>
    %85 = arith.subf %84, %78 : vector<2x32xf32>
    %86 = arith.mulf %85, %83 : vector<2x32xf32>
    %87 = arith.mulf %78, %37 : vector<2x32xf32>
    %88 = arith.addf %86, %87 : vector<2x32xf32>
    %89 = tpu.concatenate %88, %59 in 1 : vector<2x32xf32>, vector<2x32xf32> -> vector<2x64xf32>
    %cst_23 = arith.constant dense<0.000000e+00> : vector<2x128xf32>
    %90 = tpu.matmul %89, %5, %cst_23 {dimension_numbers = #tpu.dot_dimension_numbers<[1], [0], [0], [1], [0, 0, 1, 1], [], []>} : vector<2x64xf32>, vector<64x128xf32>, vector<2x128xf32> -> vector<2x128xf32>
    %91 = vector.broadcast %6 : vector<1x128xf32> to vector<2x128xf32>
    %92 = arith.addf %90, %91 : vector<2x128xf32>
    %93 = vector.extract_strided_slice %92 {offsets = [0, 0], sizes = [2, 64], strides = [1, 1]} : vector<2x128xf32> to vector<2x64xf32>
    %94 = arith.negf %93 : vector<2x64xf32>
    %95 = math.exp %94 : vector<2x64xf32>
    %cst_24 = arith.constant 1.000000e+00 : f32
    %96 = vector.broadcast %cst_24 : f32 to vector<2x64xf32>
    %97 = arith.addf %96, %95 : vector<2x64xf32>
    %98 = arith.divf %96, %97 : vector<2x64xf32>
    %99 = vector.extract_strided_slice %98 {offsets = [0, 0], sizes = [2, 32], strides = [1, 1]} : vector<2x64xf32> to vector<2x32xf32>
    %100 = vector.extract_strided_slice %98 {offsets = [0, 32], sizes = [2, 32], strides = [1, 1]} : vector<2x64xf32> to vector<2x32xf32>
    %101 = vector.extract_strided_slice %92 {offsets = [0, 64], sizes = [2, 32], strides = [1, 1]} : vector<2x128xf32> to vector<2x32xf32>
    %102 = vector.extract_strided_slice %92 {offsets = [0, 96], sizes = [2, 32], strides = [1, 1]} : vector<2x128xf32> to vector<2x32xf32>
    %103 = arith.mulf %99, %102 : vector<2x32xf32>
    %104 = arith.addf %101, %103 : vector<2x32xf32>
    %105 = math.tanh %104 : vector<2x32xf32>
    %cst_25 = arith.constant 1.000000e+00 : f32
    %106 = vector.broadcast %cst_25 : f32 to vector<2x32xf32>
    %107 = arith.subf %106, %100 : vector<2x32xf32>
    %108 = arith.mulf %107, %105 : vector<2x32xf32>
    %109 = arith.mulf %100, %59 : vector<2x32xf32>
    %110 = arith.addf %108, %109 : vector<2x32xf32>
    %111 = vector.extract_strided_slice %0 {offsets = [0, 2], sizes = [2, 1], strides = [1, 1]} : vector<2x8xf32> to vector<2x1xf32>
    %112 = vector.broadcast %111 : vector<2x1xf32> to vector<2x96xf32>
    %113 = vector.broadcast %1 : vector<1x96xf32> to vector<2x96xf32>
    %114 = arith.mulf %112, %113 : vector<2x96xf32>
    %115 = vector.broadcast %2 : vector<1x96xf32> to vector<2x96xf32>
    %116 = arith.addf %114, %115 : vector<2x96xf32>
    %cst_26 = arith.constant dense<0.000000e+00> : vector<2x96xf32>
    %117 = tpu.matmul %88, %3, %cst_26 {dimension_numbers = #tpu.dot_dimension_numbers<[1], [0], [0], [1], [0, 0, 1, 1], [], []>} : vector<2x32xf32>, vector<32x96xf32>, vector<2x96xf32> -> vector<2x96xf32>
    %118 = vector.broadcast %4 : vector<1x96xf32> to vector<2x96xf32>
    %119 = arith.addf %117, %118 : vector<2x96xf32>
    %120 = vector.extract_strided_slice %116 {offsets = [0, 0], sizes = [2, 64], strides = [1, 1]} : vector<2x96xf32> to vector<2x64xf32>
    %121 = vector.extract_strided_slice %119 {offsets = [0, 0], sizes = [2, 64], strides = [1, 1]} : vector<2x96xf32> to vector<2x64xf32>
    %122 = arith.addf %120, %121 : vector<2x64xf32>
    %123 = arith.negf %122 : vector<2x64xf32>
    %124 = math.exp %123 : vector<2x64xf32>
    %cst_27 = arith.constant 1.000000e+00 : f32
    %125 = vector.broadcast %cst_27 : f32 to vector<2x64xf32>
    %126 = arith.addf %125, %124 : vector<2x64xf32>
    %127 = arith.divf %125, %126 : vector<2x64xf32>
    %128 = vector.extract_strided_slice %127 {offsets = [0, 0], sizes = [2, 32], strides = [1, 1]} : vector<2x64xf32> to vector<2x32xf32>
    %129 = vector.extract_strided_slice %127 {offsets = [0, 32], sizes = [2, 32], strides = [1, 1]} : vector<2x64xf32> to vector<2x32xf32>
    %130 = vector.extract_strided_slice %116 {offsets = [0, 64], sizes = [2, 32], strides = [1, 1]} : vector<2x96xf32> to vector<2x32xf32>
    %131 = vector.extract_strided_slice %119 {offsets = [0, 64], sizes = [2, 32], strides = [1, 1]} : vector<2x96xf32> to vector<2x32xf32>
    %132 = arith.mulf %128, %131 : vector<2x32xf32>
    %133 = arith.addf %130, %132 : vector<2x32xf32>
    %134 = math.tanh %133 : vector<2x32xf32>
    %cst_28 = arith.constant 1.000000e+00 : f32
    %135 = vector.broadcast %cst_28 : f32 to vector<2x32xf32>
    %136 = arith.subf %135, %129 : vector<2x32xf32>
    %137 = arith.mulf %136, %134 : vector<2x32xf32>
    %138 = arith.mulf %129, %88 : vector<2x32xf32>
    %139 = arith.addf %137, %138 : vector<2x32xf32>
    %140 = tpu.concatenate %139, %110 in 1 : vector<2x32xf32>, vector<2x32xf32> -> vector<2x64xf32>
    %cst_29 = arith.constant dense<0.000000e+00> : vector<2x128xf32>
    %141 = tpu.matmul %140, %5, %cst_29 {dimension_numbers = #tpu.dot_dimension_numbers<[1], [0], [0], [1], [0, 0, 1, 1], [], []>} : vector<2x64xf32>, vector<64x128xf32>, vector<2x128xf32> -> vector<2x128xf32>
    %142 = vector.broadcast %6 : vector<1x128xf32> to vector<2x128xf32>
    %143 = arith.addf %141, %142 : vector<2x128xf32>
    %144 = vector.extract_strided_slice %143 {offsets = [0, 0], sizes = [2, 64], strides = [1, 1]} : vector<2x128xf32> to vector<2x64xf32>
    %145 = arith.negf %144 : vector<2x64xf32>
    %146 = math.exp %145 : vector<2x64xf32>
    %cst_30 = arith.constant 1.000000e+00 : f32
    %147 = vector.broadcast %cst_30 : f32 to vector<2x64xf32>
    %148 = arith.addf %147, %146 : vector<2x64xf32>
    %149 = arith.divf %147, %148 : vector<2x64xf32>
    %150 = vector.extract_strided_slice %149 {offsets = [0, 0], sizes = [2, 32], strides = [1, 1]} : vector<2x64xf32> to vector<2x32xf32>
    %151 = vector.extract_strided_slice %149 {offsets = [0, 32], sizes = [2, 32], strides = [1, 1]} : vector<2x64xf32> to vector<2x32xf32>
    %152 = vector.extract_strided_slice %143 {offsets = [0, 64], sizes = [2, 32], strides = [1, 1]} : vector<2x128xf32> to vector<2x32xf32>
    %153 = vector.extract_strided_slice %143 {offsets = [0, 96], sizes = [2, 32], strides = [1, 1]} : vector<2x128xf32> to vector<2x32xf32>
    %154 = arith.mulf %150, %153 : vector<2x32xf32>
    %155 = arith.addf %152, %154 : vector<2x32xf32>
    %156 = math.tanh %155 : vector<2x32xf32>
    %cst_31 = arith.constant 1.000000e+00 : f32
    %157 = vector.broadcast %cst_31 : f32 to vector<2x32xf32>
    %158 = arith.subf %157, %151 : vector<2x32xf32>
    %159 = arith.mulf %158, %156 : vector<2x32xf32>
    %160 = arith.mulf %151, %110 : vector<2x32xf32>
    %161 = arith.addf %159, %160 : vector<2x32xf32>
    %162 = vector.extract_strided_slice %0 {offsets = [0, 3], sizes = [2, 1], strides = [1, 1]} : vector<2x8xf32> to vector<2x1xf32>
    %163 = vector.broadcast %162 : vector<2x1xf32> to vector<2x96xf32>
    %164 = vector.broadcast %1 : vector<1x96xf32> to vector<2x96xf32>
    %165 = arith.mulf %163, %164 : vector<2x96xf32>
    %166 = vector.broadcast %2 : vector<1x96xf32> to vector<2x96xf32>
    %167 = arith.addf %165, %166 : vector<2x96xf32>
    %cst_32 = arith.constant dense<0.000000e+00> : vector<2x96xf32>
    %168 = tpu.matmul %139, %3, %cst_32 {dimension_numbers = #tpu.dot_dimension_numbers<[1], [0], [0], [1], [0, 0, 1, 1], [], []>} : vector<2x32xf32>, vector<32x96xf32>, vector<2x96xf32> -> vector<2x96xf32>
    %169 = vector.broadcast %4 : vector<1x96xf32> to vector<2x96xf32>
    %170 = arith.addf %168, %169 : vector<2x96xf32>
    %171 = vector.extract_strided_slice %167 {offsets = [0, 0], sizes = [2, 64], strides = [1, 1]} : vector<2x96xf32> to vector<2x64xf32>
    %172 = vector.extract_strided_slice %170 {offsets = [0, 0], sizes = [2, 64], strides = [1, 1]} : vector<2x96xf32> to vector<2x64xf32>
    %173 = arith.addf %171, %172 : vector<2x64xf32>
    %174 = arith.negf %173 : vector<2x64xf32>
    %175 = math.exp %174 : vector<2x64xf32>
    %cst_33 = arith.constant 1.000000e+00 : f32
    %176 = vector.broadcast %cst_33 : f32 to vector<2x64xf32>
    %177 = arith.addf %176, %175 : vector<2x64xf32>
    %178 = arith.divf %176, %177 : vector<2x64xf32>
    %179 = vector.extract_strided_slice %178 {offsets = [0, 0], sizes = [2, 32], strides = [1, 1]} : vector<2x64xf32> to vector<2x32xf32>
    %180 = vector.extract_strided_slice %178 {offsets = [0, 32], sizes = [2, 32], strides = [1, 1]} : vector<2x64xf32> to vector<2x32xf32>
    %181 = vector.extract_strided_slice %167 {offsets = [0, 64], sizes = [2, 32], strides = [1, 1]} : vector<2x96xf32> to vector<2x32xf32>
    %182 = vector.extract_strided_slice %170 {offsets = [0, 64], sizes = [2, 32], strides = [1, 1]} : vector<2x96xf32> to vector<2x32xf32>
    %183 = arith.mulf %179, %182 : vector<2x32xf32>
    %184 = arith.addf %181, %183 : vector<2x32xf32>
    %185 = math.tanh %184 : vector<2x32xf32>
    %cst_34 = arith.constant 1.000000e+00 : f32
    %186 = vector.broadcast %cst_34 : f32 to vector<2x32xf32>
    %187 = arith.subf %186, %180 : vector<2x32xf32>
    %188 = arith.mulf %187, %185 : vector<2x32xf32>
    %189 = arith.mulf %180, %139 : vector<2x32xf32>
    %190 = arith.addf %188, %189 : vector<2x32xf32>
    %191 = tpu.concatenate %190, %161 in 1 : vector<2x32xf32>, vector<2x32xf32> -> vector<2x64xf32>
    %cst_35 = arith.constant dense<0.000000e+00> : vector<2x128xf32>
    %192 = tpu.matmul %191, %5, %cst_35 {dimension_numbers = #tpu.dot_dimension_numbers<[1], [0], [0], [1], [0, 0, 1, 1], [], []>} : vector<2x64xf32>, vector<64x128xf32>, vector<2x128xf32> -> vector<2x128xf32>
    %193 = vector.broadcast %6 : vector<1x128xf32> to vector<2x128xf32>
    %194 = arith.addf %192, %193 : vector<2x128xf32>
    %195 = vector.extract_strided_slice %194 {offsets = [0, 0], sizes = [2, 64], strides = [1, 1]} : vector<2x128xf32> to vector<2x64xf32>
    %196 = arith.negf %195 : vector<2x64xf32>
    %197 = math.exp %196 : vector<2x64xf32>
    %cst_36 = arith.constant 1.000000e+00 : f32
    %198 = vector.broadcast %cst_36 : f32 to vector<2x64xf32>
    %199 = arith.addf %198, %197 : vector<2x64xf32>
    %200 = arith.divf %198, %199 : vector<2x64xf32>
    %201 = vector.extract_strided_slice %200 {offsets = [0, 0], sizes = [2, 32], strides = [1, 1]} : vector<2x64xf32> to vector<2x32xf32>
    %202 = vector.extract_strided_slice %200 {offsets = [0, 32], sizes = [2, 32], strides = [1, 1]} : vector<2x64xf32> to vector<2x32xf32>
    %203 = vector.extract_strided_slice %194 {offsets = [0, 64], sizes = [2, 32], strides = [1, 1]} : vector<2x128xf32> to vector<2x32xf32>
    %204 = vector.extract_strided_slice %194 {offsets = [0, 96], sizes = [2, 32], strides = [1, 1]} : vector<2x128xf32> to vector<2x32xf32>
    %205 = arith.mulf %201, %204 : vector<2x32xf32>
    %206 = arith.addf %203, %205 : vector<2x32xf32>
    %207 = math.tanh %206 : vector<2x32xf32>
    %cst_37 = arith.constant 1.000000e+00 : f32
    %208 = vector.broadcast %cst_37 : f32 to vector<2x32xf32>
    %209 = arith.subf %208, %202 : vector<2x32xf32>
    %210 = arith.mulf %209, %207 : vector<2x32xf32>
    %211 = arith.mulf %202, %161 : vector<2x32xf32>
    %212 = arith.addf %210, %211 : vector<2x32xf32>
    %213 = vector.extract_strided_slice %0 {offsets = [0, 4], sizes = [2, 1], strides = [1, 1]} : vector<2x8xf32> to vector<2x1xf32>
    %214 = vector.broadcast %213 : vector<2x1xf32> to vector<2x96xf32>
    %215 = vector.broadcast %1 : vector<1x96xf32> to vector<2x96xf32>
    %216 = arith.mulf %214, %215 : vector<2x96xf32>
    %217 = vector.broadcast %2 : vector<1x96xf32> to vector<2x96xf32>
    %218 = arith.addf %216, %217 : vector<2x96xf32>
    %cst_38 = arith.constant dense<0.000000e+00> : vector<2x96xf32>
    %219 = tpu.matmul %190, %3, %cst_38 {dimension_numbers = #tpu.dot_dimension_numbers<[1], [0], [0], [1], [0, 0, 1, 1], [], []>} : vector<2x32xf32>, vector<32x96xf32>, vector<2x96xf32> -> vector<2x96xf32>
    %220 = vector.broadcast %4 : vector<1x96xf32> to vector<2x96xf32>
    %221 = arith.addf %219, %220 : vector<2x96xf32>
    %222 = vector.extract_strided_slice %218 {offsets = [0, 0], sizes = [2, 64], strides = [1, 1]} : vector<2x96xf32> to vector<2x64xf32>
    %223 = vector.extract_strided_slice %221 {offsets = [0, 0], sizes = [2, 64], strides = [1, 1]} : vector<2x96xf32> to vector<2x64xf32>
    %224 = arith.addf %222, %223 : vector<2x64xf32>
    %225 = arith.negf %224 : vector<2x64xf32>
    %226 = math.exp %225 : vector<2x64xf32>
    %cst_39 = arith.constant 1.000000e+00 : f32
    %227 = vector.broadcast %cst_39 : f32 to vector<2x64xf32>
    %228 = arith.addf %227, %226 : vector<2x64xf32>
    %229 = arith.divf %227, %228 : vector<2x64xf32>
    %230 = vector.extract_strided_slice %229 {offsets = [0, 0], sizes = [2, 32], strides = [1, 1]} : vector<2x64xf32> to vector<2x32xf32>
    %231 = vector.extract_strided_slice %229 {offsets = [0, 32], sizes = [2, 32], strides = [1, 1]} : vector<2x64xf32> to vector<2x32xf32>
    %232 = vector.extract_strided_slice %218 {offsets = [0, 64], sizes = [2, 32], strides = [1, 1]} : vector<2x96xf32> to vector<2x32xf32>
    %233 = vector.extract_strided_slice %221 {offsets = [0, 64], sizes = [2, 32], strides = [1, 1]} : vector<2x96xf32> to vector<2x32xf32>
    %234 = arith.mulf %230, %233 : vector<2x32xf32>
    %235 = arith.addf %232, %234 : vector<2x32xf32>
    %236 = math.tanh %235 : vector<2x32xf32>
    %cst_40 = arith.constant 1.000000e+00 : f32
    %237 = vector.broadcast %cst_40 : f32 to vector<2x32xf32>
    %238 = arith.subf %237, %231 : vector<2x32xf32>
    %239 = arith.mulf %238, %236 : vector<2x32xf32>
    %240 = arith.mulf %231, %190 : vector<2x32xf32>
    %241 = arith.addf %239, %240 : vector<2x32xf32>
    %242 = tpu.concatenate %241, %212 in 1 : vector<2x32xf32>, vector<2x32xf32> -> vector<2x64xf32>
    %cst_41 = arith.constant dense<0.000000e+00> : vector<2x128xf32>
    %243 = tpu.matmul %242, %5, %cst_41 {dimension_numbers = #tpu.dot_dimension_numbers<[1], [0], [0], [1], [0, 0, 1, 1], [], []>} : vector<2x64xf32>, vector<64x128xf32>, vector<2x128xf32> -> vector<2x128xf32>
    %244 = vector.broadcast %6 : vector<1x128xf32> to vector<2x128xf32>
    %245 = arith.addf %243, %244 : vector<2x128xf32>
    %246 = vector.extract_strided_slice %245 {offsets = [0, 0], sizes = [2, 64], strides = [1, 1]} : vector<2x128xf32> to vector<2x64xf32>
    %247 = arith.negf %246 : vector<2x64xf32>
    %248 = math.exp %247 : vector<2x64xf32>
    %cst_42 = arith.constant 1.000000e+00 : f32
    %249 = vector.broadcast %cst_42 : f32 to vector<2x64xf32>
    %250 = arith.addf %249, %248 : vector<2x64xf32>
    %251 = arith.divf %249, %250 : vector<2x64xf32>
    %252 = vector.extract_strided_slice %251 {offsets = [0, 0], sizes = [2, 32], strides = [1, 1]} : vector<2x64xf32> to vector<2x32xf32>
    %253 = vector.extract_strided_slice %251 {offsets = [0, 32], sizes = [2, 32], strides = [1, 1]} : vector<2x64xf32> to vector<2x32xf32>
    %254 = vector.extract_strided_slice %245 {offsets = [0, 64], sizes = [2, 32], strides = [1, 1]} : vector<2x128xf32> to vector<2x32xf32>
    %255 = vector.extract_strided_slice %245 {offsets = [0, 96], sizes = [2, 32], strides = [1, 1]} : vector<2x128xf32> to vector<2x32xf32>
    %256 = arith.mulf %252, %255 : vector<2x32xf32>
    %257 = arith.addf %254, %256 : vector<2x32xf32>
    %258 = math.tanh %257 : vector<2x32xf32>
    %cst_43 = arith.constant 1.000000e+00 : f32
    %259 = vector.broadcast %cst_43 : f32 to vector<2x32xf32>
    %260 = arith.subf %259, %253 : vector<2x32xf32>
    %261 = arith.mulf %260, %258 : vector<2x32xf32>
    %262 = arith.mulf %253, %212 : vector<2x32xf32>
    %263 = arith.addf %261, %262 : vector<2x32xf32>
    %264 = vector.extract_strided_slice %0 {offsets = [0, 5], sizes = [2, 1], strides = [1, 1]} : vector<2x8xf32> to vector<2x1xf32>
    %265 = vector.broadcast %264 : vector<2x1xf32> to vector<2x96xf32>
    %266 = vector.broadcast %1 : vector<1x96xf32> to vector<2x96xf32>
    %267 = arith.mulf %265, %266 : vector<2x96xf32>
    %268 = vector.broadcast %2 : vector<1x96xf32> to vector<2x96xf32>
    %269 = arith.addf %267, %268 : vector<2x96xf32>
    %cst_44 = arith.constant dense<0.000000e+00> : vector<2x96xf32>
    %270 = tpu.matmul %241, %3, %cst_44 {dimension_numbers = #tpu.dot_dimension_numbers<[1], [0], [0], [1], [0, 0, 1, 1], [], []>} : vector<2x32xf32>, vector<32x96xf32>, vector<2x96xf32> -> vector<2x96xf32>
    %271 = vector.broadcast %4 : vector<1x96xf32> to vector<2x96xf32>
    %272 = arith.addf %270, %271 : vector<2x96xf32>
    %273 = vector.extract_strided_slice %269 {offsets = [0, 0], sizes = [2, 64], strides = [1, 1]} : vector<2x96xf32> to vector<2x64xf32>
    %274 = vector.extract_strided_slice %272 {offsets = [0, 0], sizes = [2, 64], strides = [1, 1]} : vector<2x96xf32> to vector<2x64xf32>
    %275 = arith.addf %273, %274 : vector<2x64xf32>
    %276 = arith.negf %275 : vector<2x64xf32>
    %277 = math.exp %276 : vector<2x64xf32>
    %cst_45 = arith.constant 1.000000e+00 : f32
    %278 = vector.broadcast %cst_45 : f32 to vector<2x64xf32>
    %279 = arith.addf %278, %277 : vector<2x64xf32>
    %280 = arith.divf %278, %279 : vector<2x64xf32>
    %281 = vector.extract_strided_slice %280 {offsets = [0, 0], sizes = [2, 32], strides = [1, 1]} : vector<2x64xf32> to vector<2x32xf32>
    %282 = vector.extract_strided_slice %280 {offsets = [0, 32], sizes = [2, 32], strides = [1, 1]} : vector<2x64xf32> to vector<2x32xf32>
    %283 = vector.extract_strided_slice %269 {offsets = [0, 64], sizes = [2, 32], strides = [1, 1]} : vector<2x96xf32> to vector<2x32xf32>
    %284 = vector.extract_strided_slice %272 {offsets = [0, 64], sizes = [2, 32], strides = [1, 1]} : vector<2x96xf32> to vector<2x32xf32>
    %285 = arith.mulf %281, %284 : vector<2x32xf32>
    %286 = arith.addf %283, %285 : vector<2x32xf32>
    %287 = math.tanh %286 : vector<2x32xf32>
    %cst_46 = arith.constant 1.000000e+00 : f32
    %288 = vector.broadcast %cst_46 : f32 to vector<2x32xf32>
    %289 = arith.subf %288, %282 : vector<2x32xf32>
    %290 = arith.mulf %289, %287 : vector<2x32xf32>
    %291 = arith.mulf %282, %241 : vector<2x32xf32>
    %292 = arith.addf %290, %291 : vector<2x32xf32>
    %293 = tpu.concatenate %292, %263 in 1 : vector<2x32xf32>, vector<2x32xf32> -> vector<2x64xf32>
    %cst_47 = arith.constant dense<0.000000e+00> : vector<2x128xf32>
    %294 = tpu.matmul %293, %5, %cst_47 {dimension_numbers = #tpu.dot_dimension_numbers<[1], [0], [0], [1], [0, 0, 1, 1], [], []>} : vector<2x64xf32>, vector<64x128xf32>, vector<2x128xf32> -> vector<2x128xf32>
    %295 = vector.broadcast %6 : vector<1x128xf32> to vector<2x128xf32>
    %296 = arith.addf %294, %295 : vector<2x128xf32>
    %297 = vector.extract_strided_slice %296 {offsets = [0, 0], sizes = [2, 64], strides = [1, 1]} : vector<2x128xf32> to vector<2x64xf32>
    %298 = arith.negf %297 : vector<2x64xf32>
    %299 = math.exp %298 : vector<2x64xf32>
    %cst_48 = arith.constant 1.000000e+00 : f32
    %300 = vector.broadcast %cst_48 : f32 to vector<2x64xf32>
    %301 = arith.addf %300, %299 : vector<2x64xf32>
    %302 = arith.divf %300, %301 : vector<2x64xf32>
    %303 = vector.extract_strided_slice %302 {offsets = [0, 0], sizes = [2, 32], strides = [1, 1]} : vector<2x64xf32> to vector<2x32xf32>
    %304 = vector.extract_strided_slice %302 {offsets = [0, 32], sizes = [2, 32], strides = [1, 1]} : vector<2x64xf32> to vector<2x32xf32>
    %305 = vector.extract_strided_slice %296 {offsets = [0, 64], sizes = [2, 32], strides = [1, 1]} : vector<2x128xf32> to vector<2x32xf32>
    %306 = vector.extract_strided_slice %296 {offsets = [0, 96], sizes = [2, 32], strides = [1, 1]} : vector<2x128xf32> to vector<2x32xf32>
    %307 = arith.mulf %303, %306 : vector<2x32xf32>
    %308 = arith.addf %305, %307 : vector<2x32xf32>
    %309 = math.tanh %308 : vector<2x32xf32>
    %cst_49 = arith.constant 1.000000e+00 : f32
    %310 = vector.broadcast %cst_49 : f32 to vector<2x32xf32>
    %311 = arith.subf %310, %304 : vector<2x32xf32>
    %312 = arith.mulf %311, %309 : vector<2x32xf32>
    %313 = arith.mulf %304, %263 : vector<2x32xf32>
    %314 = arith.addf %312, %313 : vector<2x32xf32>
    %315 = vector.extract_strided_slice %0 {offsets = [0, 6], sizes = [2, 1], strides = [1, 1]} : vector<2x8xf32> to vector<2x1xf32>
    %316 = vector.broadcast %315 : vector<2x1xf32> to vector<2x96xf32>
    %317 = vector.broadcast %1 : vector<1x96xf32> to vector<2x96xf32>
    %318 = arith.mulf %316, %317 : vector<2x96xf32>
    %319 = vector.broadcast %2 : vector<1x96xf32> to vector<2x96xf32>
    %320 = arith.addf %318, %319 : vector<2x96xf32>
    %cst_50 = arith.constant dense<0.000000e+00> : vector<2x96xf32>
    %321 = tpu.matmul %292, %3, %cst_50 {dimension_numbers = #tpu.dot_dimension_numbers<[1], [0], [0], [1], [0, 0, 1, 1], [], []>} : vector<2x32xf32>, vector<32x96xf32>, vector<2x96xf32> -> vector<2x96xf32>
    %322 = vector.broadcast %4 : vector<1x96xf32> to vector<2x96xf32>
    %323 = arith.addf %321, %322 : vector<2x96xf32>
    %324 = vector.extract_strided_slice %320 {offsets = [0, 0], sizes = [2, 64], strides = [1, 1]} : vector<2x96xf32> to vector<2x64xf32>
    %325 = vector.extract_strided_slice %323 {offsets = [0, 0], sizes = [2, 64], strides = [1, 1]} : vector<2x96xf32> to vector<2x64xf32>
    %326 = arith.addf %324, %325 : vector<2x64xf32>
    %327 = arith.negf %326 : vector<2x64xf32>
    %328 = math.exp %327 : vector<2x64xf32>
    %cst_51 = arith.constant 1.000000e+00 : f32
    %329 = vector.broadcast %cst_51 : f32 to vector<2x64xf32>
    %330 = arith.addf %329, %328 : vector<2x64xf32>
    %331 = arith.divf %329, %330 : vector<2x64xf32>
    %332 = vector.extract_strided_slice %331 {offsets = [0, 0], sizes = [2, 32], strides = [1, 1]} : vector<2x64xf32> to vector<2x32xf32>
    %333 = vector.extract_strided_slice %331 {offsets = [0, 32], sizes = [2, 32], strides = [1, 1]} : vector<2x64xf32> to vector<2x32xf32>
    %334 = vector.extract_strided_slice %320 {offsets = [0, 64], sizes = [2, 32], strides = [1, 1]} : vector<2x96xf32> to vector<2x32xf32>
    %335 = vector.extract_strided_slice %323 {offsets = [0, 64], sizes = [2, 32], strides = [1, 1]} : vector<2x96xf32> to vector<2x32xf32>
    %336 = arith.mulf %332, %335 : vector<2x32xf32>
    %337 = arith.addf %334, %336 : vector<2x32xf32>
    %338 = math.tanh %337 : vector<2x32xf32>
    %cst_52 = arith.constant 1.000000e+00 : f32
    %339 = vector.broadcast %cst_52 : f32 to vector<2x32xf32>
    %340 = arith.subf %339, %333 : vector<2x32xf32>
    %341 = arith.mulf %340, %338 : vector<2x32xf32>
    %342 = arith.mulf %333, %292 : vector<2x32xf32>
    %343 = arith.addf %341, %342 : vector<2x32xf32>
    %344 = tpu.concatenate %343, %314 in 1 : vector<2x32xf32>, vector<2x32xf32> -> vector<2x64xf32>
    %cst_53 = arith.constant dense<0.000000e+00> : vector<2x128xf32>
    %345 = tpu.matmul %344, %5, %cst_53 {dimension_numbers = #tpu.dot_dimension_numbers<[1], [0], [0], [1], [0, 0, 1, 1], [], []>} : vector<2x64xf32>, vector<64x128xf32>, vector<2x128xf32> -> vector<2x128xf32>
    %346 = vector.broadcast %6 : vector<1x128xf32> to vector<2x128xf32>
    %347 = arith.addf %345, %346 : vector<2x128xf32>
    %348 = vector.extract_strided_slice %347 {offsets = [0, 0], sizes = [2, 64], strides = [1, 1]} : vector<2x128xf32> to vector<2x64xf32>
    %349 = arith.negf %348 : vector<2x64xf32>
    %350 = math.exp %349 : vector<2x64xf32>
    %cst_54 = arith.constant 1.000000e+00 : f32
    %351 = vector.broadcast %cst_54 : f32 to vector<2x64xf32>
    %352 = arith.addf %351, %350 : vector<2x64xf32>
    %353 = arith.divf %351, %352 : vector<2x64xf32>
    %354 = vector.extract_strided_slice %353 {offsets = [0, 0], sizes = [2, 32], strides = [1, 1]} : vector<2x64xf32> to vector<2x32xf32>
    %355 = vector.extract_strided_slice %353 {offsets = [0, 32], sizes = [2, 32], strides = [1, 1]} : vector<2x64xf32> to vector<2x32xf32>
    %356 = vector.extract_strided_slice %347 {offsets = [0, 64], sizes = [2, 32], strides = [1, 1]} : vector<2x128xf32> to vector<2x32xf32>
    %357 = vector.extract_strided_slice %347 {offsets = [0, 96], sizes = [2, 32], strides = [1, 1]} : vector<2x128xf32> to vector<2x32xf32>
    %358 = arith.mulf %354, %357 : vector<2x32xf32>
    %359 = arith.addf %356, %358 : vector<2x32xf32>
    %360 = math.tanh %359 : vector<2x32xf32>
    %cst_55 = arith.constant 1.000000e+00 : f32
    %361 = vector.broadcast %cst_55 : f32 to vector<2x32xf32>
    %362 = arith.subf %361, %355 : vector<2x32xf32>
    %363 = arith.mulf %362, %360 : vector<2x32xf32>
    %364 = arith.mulf %355, %314 : vector<2x32xf32>
    %365 = arith.addf %363, %364 : vector<2x32xf32>
    %366 = vector.extract_strided_slice %0 {offsets = [0, 7], sizes = [2, 1], strides = [1, 1]} : vector<2x8xf32> to vector<2x1xf32>
    %367 = vector.broadcast %366 : vector<2x1xf32> to vector<2x96xf32>
    %368 = vector.broadcast %1 : vector<1x96xf32> to vector<2x96xf32>
    %369 = arith.mulf %367, %368 : vector<2x96xf32>
    %370 = vector.broadcast %2 : vector<1x96xf32> to vector<2x96xf32>
    %371 = arith.addf %369, %370 : vector<2x96xf32>
    %cst_56 = arith.constant dense<0.000000e+00> : vector<2x96xf32>
    %372 = tpu.matmul %343, %3, %cst_56 {dimension_numbers = #tpu.dot_dimension_numbers<[1], [0], [0], [1], [0, 0, 1, 1], [], []>} : vector<2x32xf32>, vector<32x96xf32>, vector<2x96xf32> -> vector<2x96xf32>
    %373 = vector.broadcast %4 : vector<1x96xf32> to vector<2x96xf32>
    %374 = arith.addf %372, %373 : vector<2x96xf32>
    %375 = vector.extract_strided_slice %371 {offsets = [0, 0], sizes = [2, 64], strides = [1, 1]} : vector<2x96xf32> to vector<2x64xf32>
    %376 = vector.extract_strided_slice %374 {offsets = [0, 0], sizes = [2, 64], strides = [1, 1]} : vector<2x96xf32> to vector<2x64xf32>
    %377 = arith.addf %375, %376 : vector<2x64xf32>
    %378 = arith.negf %377 : vector<2x64xf32>
    %379 = math.exp %378 : vector<2x64xf32>
    %cst_57 = arith.constant 1.000000e+00 : f32
    %380 = vector.broadcast %cst_57 : f32 to vector<2x64xf32>
    %381 = arith.addf %380, %379 : vector<2x64xf32>
    %382 = arith.divf %380, %381 : vector<2x64xf32>
    %383 = vector.extract_strided_slice %382 {offsets = [0, 0], sizes = [2, 32], strides = [1, 1]} : vector<2x64xf32> to vector<2x32xf32>
    %384 = vector.extract_strided_slice %382 {offsets = [0, 32], sizes = [2, 32], strides = [1, 1]} : vector<2x64xf32> to vector<2x32xf32>
    %385 = vector.extract_strided_slice %371 {offsets = [0, 64], sizes = [2, 32], strides = [1, 1]} : vector<2x96xf32> to vector<2x32xf32>
    %386 = vector.extract_strided_slice %374 {offsets = [0, 64], sizes = [2, 32], strides = [1, 1]} : vector<2x96xf32> to vector<2x32xf32>
    %387 = arith.mulf %383, %386 : vector<2x32xf32>
    %388 = arith.addf %385, %387 : vector<2x32xf32>
    %389 = math.tanh %388 : vector<2x32xf32>
    %cst_58 = arith.constant 1.000000e+00 : f32
    %390 = vector.broadcast %cst_58 : f32 to vector<2x32xf32>
    %391 = arith.subf %390, %384 : vector<2x32xf32>
    %392 = arith.mulf %391, %389 : vector<2x32xf32>
    %393 = arith.mulf %384, %343 : vector<2x32xf32>
    %394 = arith.addf %392, %393 : vector<2x32xf32>
    %395 = tpu.concatenate %394, %365 in 1 : vector<2x32xf32>, vector<2x32xf32> -> vector<2x64xf32>
    %cst_59 = arith.constant dense<0.000000e+00> : vector<2x128xf32>
    %396 = tpu.matmul %395, %5, %cst_59 {dimension_numbers = #tpu.dot_dimension_numbers<[1], [0], [0], [1], [0, 0, 1, 1], [], []>} : vector<2x64xf32>, vector<64x128xf32>, vector<2x128xf32> -> vector<2x128xf32>
    %397 = vector.broadcast %6 : vector<1x128xf32> to vector<2x128xf32>
    %398 = arith.addf %396, %397 : vector<2x128xf32>
    %399 = vector.extract_strided_slice %398 {offsets = [0, 0], sizes = [2, 64], strides = [1, 1]} : vector<2x128xf32> to vector<2x64xf32>
    %400 = arith.negf %399 : vector<2x64xf32>
    %401 = math.exp %400 : vector<2x64xf32>
    %cst_60 = arith.constant 1.000000e+00 : f32
    %402 = vector.broadcast %cst_60 : f32 to vector<2x64xf32>
    %403 = arith.addf %402, %401 : vector<2x64xf32>
    %404 = arith.divf %402, %403 : vector<2x64xf32>
    %405 = vector.extract_strided_slice %404 {offsets = [0, 0], sizes = [2, 32], strides = [1, 1]} : vector<2x64xf32> to vector<2x32xf32>
    %406 = vector.extract_strided_slice %404 {offsets = [0, 32], sizes = [2, 32], strides = [1, 1]} : vector<2x64xf32> to vector<2x32xf32>
    %407 = vector.extract_strided_slice %398 {offsets = [0, 64], sizes = [2, 32], strides = [1, 1]} : vector<2x128xf32> to vector<2x32xf32>
    %408 = vector.extract_strided_slice %398 {offsets = [0, 96], sizes = [2, 32], strides = [1, 1]} : vector<2x128xf32> to vector<2x32xf32>
    %409 = arith.mulf %405, %408 : vector<2x32xf32>
    %410 = arith.addf %407, %409 : vector<2x32xf32>
    %411 = math.tanh %410 : vector<2x32xf32>
    %cst_61 = arith.constant 1.000000e+00 : f32
    %412 = vector.broadcast %cst_61 : f32 to vector<2x32xf32>
    %413 = arith.subf %412, %406 : vector<2x32xf32>
    %414 = arith.mulf %413, %411 : vector<2x32xf32>
    %415 = arith.mulf %406, %365 : vector<2x32xf32>
    %416 = arith.addf %414, %415 : vector<2x32xf32>
    %c0_62 = arith.constant 0 : index
    %c0_63 = arith.constant 0 : index
    %417 = vector.load %arg7[%c0_62, %c0_63] : memref<32x128xf32, #tpu.memory_space<vmem>>, vector<32x128xf32>
    %cst_64 = arith.constant dense<0.000000e+00> : vector<2x128xf32>
    %418 = tpu.matmul %416, %417, %cst_64 {dimension_numbers = #tpu.dot_dimension_numbers<[1], [0], [0], [1], [0, 0, 1, 1], [], []>} : vector<2x32xf32>, vector<32x128xf32>, vector<2x128xf32> -> vector<2x128xf32>
    %c0_65 = arith.constant 0 : index
    %c0_66 = arith.constant 0 : index
    %419 = vector.load %arg8[%c0_65, %c0_66] : memref<1x128xf32, #tpu.memory_space<vmem>>, vector<1x128xf32>
    %420 = vector.broadcast %419 : vector<1x128xf32> to vector<2x128xf32>
    %421 = arith.addf %418, %420 : vector<2x128xf32>
    %422 = math.tanh %421 : vector<2x128xf32>
    %c0_67 = arith.constant 0 : index
    %c0_68 = arith.constant 0 : index
    %423 = vector.load %arg9[%c0_67, %c0_68] : memref<2x128xf32, #tpu.memory_space<vmem>>, vector<2x128xf32>
    tpu.vector_store %arg9[%c0_67, %c0_68], %422 {strides = array<i32>} : memref<2x128xf32, #tpu.memory_space<vmem>>, vector<2x128xf32>,
    return
  }
}

</mosaic_0001>

<llo_original>
// kernel: tpu_custom_call.1
$region0: #{tpu_custom_call.1}
  #allocation0 [shape = 'u32[]', space=smem, size = 0x4, offset = 0x4, fixed_abs, tag = 'smem constant byte address 0x4 - core index']
  #allocation1 [shape = 'u32[144,128]{1,0:T(1,128)}', space=vmem, size = 0x12000, scoped, tag = 'internal scratch']
  %s0 = inlined_call_operand.hbm [shape: f32[2,8], index: 0, kind: input, shape index: {}]
  %s1 = inlined_call_operand.vmem [shape: f32[1,96], index: 1, kind: input, shape index: {}]
  %s2 = inlined_call_operand.vmem [shape: f32[1,96], index: 2, kind: input, shape index: {}]
  %s3 = inlined_call_operand.hbm [shape: f32[32,96], index: 3, kind: input, shape index: {}]
  %s4 = inlined_call_operand.vmem [shape: f32[1,96], index: 4, kind: input, shape index: {}]
  %s5 = inlined_call_operand.hbm [shape: f32[64,128], index: 5, kind: input, shape index: {}]
  %s6 = inlined_call_operand.vmem [shape: f32[1,128], index: 6, kind: input, shape index: {}]
  %s7 = inlined_call_operand.hbm [shape: f32[32,128], index: 7, kind: input, shape index: {}]
  %s8 = inlined_call_operand.vmem [shape: f32[1,128], index: 8, kind: input, shape index: {}]
  %s9 = inlined_call_operand.hbm [shape: f32[2,128], index: 9, kind: output, shape index: {}]
  %s10 = sld [smem:[#allocation0]]
  $region62: #{tpu_custom_call.1} parent=0
    _
  %s12 = ssub.s32 1, %s10
  %s13 = scalar_select 0, %s12, %s10
  $region1: #{tpu_custom_call.1} parent=0
    #allocation2 [shape = 'u8[1024]{0}', space=vmem, size = 0x400, scoped, tag = 'input window, operand 0, single buffered']
    #allocation3 [shape = 's32[1]{0}', space=sflag, size = 0x4, scoped, tag = 'scoped memory for tpu_custom_call.1']
    #allocation4 [shape = 's32[1]{0}', space=sflag, size = 0x4, scoped, tag = 'scoped memory for tpu_custom_call.1']
    #allocation5 [shape = 'u8[16384]{0}', space=vmem, size = 0x4000, scoped, tag = 'input window, operand 3, single buffered']
    #allocation6 [shape = 's32[1]{0}', space=sflag, size = 0x4, scoped, tag = 'scoped memory for tpu_custom_call.1']
    #allocation7 [shape = 'u8[32768]{0}', space=vmem, size = 0x8000, scoped, tag = 'input window, operand 5, single buffered']
    #allocation8 [shape = 'u8[16384]{0}', space=vmem, size = 0x4000, scoped, tag = 'input window, operand 7, single buffered']
    #allocation9 [shape = 's32[1]{0}', space=sflag, size = 0x4, scoped, tag = 'scoped memory for tpu_custom_call.1']
    #allocation10 [shape = 'u8[1024]{0}', space=vmem, size = 0x400, scoped, tag = 'output window, operand 0, single buffered']
    %14 = vsyncpa [#allocation3], 0
    %15 = vsyncpa [#allocation6], 0
    %16 = vsyncpa [#allocation9], 0
    %17 = vsyncpa [#allocation4], 0
    // Predicated region
    $region2: #{tpu_custom_call.1} parent=1 // pred_check
      _
    $region3: #{tpu_custom_call.1} parent=1 // pred_check_branch
      %19 = sbr.rel (0) target = $region5
    $region4: #{tpu_custom_call.1} parent=1 // pred_region
      %s21 = ssub.s32 32, 32
      %22 = vsyncadd [#allocation3], %s21
      %s24 = sshll.u32 [#allocation2], 4
      %s25 = int_to_ptr.vmem [resolvable:$true] %s24
      %27 = dma.hbm_to_vmem [thread:$0]  %s0, 32, %s25, [#allocation3]
    $region5: #{tpu_custom_call.1} parent=1 // pred_fallthru
      _
    // Predicated region
    $region6: #{tpu_custom_call.1} parent=1 // pred_check
      _
    $region7: #{tpu_custom_call.1} parent=1 // pred_check_branch
      %29 = sbr.rel (0) target = $region9
    $region8: #{tpu_custom_call.1} parent=1 // pred_region
      _
    $region9: #{tpu_custom_call.1} parent=1 // pred_fallthru
      _
    // Predicated region
    $region10: #{tpu_custom_call.1} parent=1 // pred_check
      _
    $region11: #{tpu_custom_call.1} parent=1 // pred_check_branch
      %31 = sbr.rel (0) target = $region13
    $region12: #{tpu_custom_call.1} parent=1 // pred_region
      _
    $region13: #{tpu_custom_call.1} parent=1 // pred_fallthru
      _
    // Predicated region
    $region14: #{tpu_custom_call.1} parent=1 // pred_check
      _
    $region15: #{tpu_custom_call.1} parent=1 // pred_check_branch
      %33 = sbr.rel (0) target = $region17
    $region16: #{tpu_custom_call.1} parent=1 // pred_region
      %s35 = ssub.s32 512, 512
      %36 = vsyncadd [#allocation6], %s35
      %s37 = sshll.u32 [#allocation5], 4
      %s38 = int_to_ptr.vmem [resolvable:$true] %s37
      %43 = dma.hbm_to_vmem [thread:$0]  %s3, 512, %s38, [#allocation6], 128, 128, 8
    $region17: #{tpu_custom_call.1} parent=1 // pred_fallthru
      _
    // Predicated region
    $region18: #{tpu_custom_call.1} parent=1 // pred_check
      _
    $region19: #{tpu_custom_call.1} parent=1 // pred_check_branch
      %45 = sbr.rel (0) target = $region21
    $region20: #{tpu_custom_call.1} parent=1 // pred_region
      _
    $region21: #{tpu_custom_call.1} parent=1 // pred_fallthru
      _
    // Predicated region
    $region22: #{tpu_custom_call.1} parent=1 // pred_check
      _
    $region23: #{tpu_custom_call.1} parent=1 // pred_check_branch
      %47 = sbr.rel (0) target = $region25
    $region24: #{tpu_custom_call.1} parent=1 // pred_region
      %s49 = ssub.s32 1024, 1024
      %50 = vsyncadd [#allocation6], %s49
      %s51 = sshll.u32 [#allocation7], 4
      %s52 = int_to_ptr.vmem [resolvable:$true] %s51
      %57 = dma.hbm_to_vmem [thread:$0]  %s5, 1024, %s52, [#allocation6], 128, 128, 8
    $region25: #{tpu_custom_call.1} parent=1 // pred_fallthru
      _
    // Predicated region
    $region26: #{tpu_custom_call.1} parent=1 // pred_check
      _
    $region27: #{tpu_custom_call.1} parent=1 // pred_check_branch
      %59 = sbr.rel (0) target = $region29
    $region28: #{tpu_custom_call.1} parent=1 // pred_region
      _
    $region29: #{tpu_custom_call.1} parent=1 // pred_fallthru
      _
    // Predicated region
    $region30: #{tpu_custom_call.1} parent=1 // pred_check
      _
    $region31: #{tpu_custom_call.1} parent=1 // pred_check_branch
      %61 = sbr.rel (0) target = $region33
    $region32: #{tpu_custom_call.1} parent=1 // pred_region
      %s63 = ssub.s32 512, 512
      %64 = vsyncadd [#allocation9], %s63
      %s65 = sshll.u32 [#allocation8], 4
      %s66 = int_to_ptr.vmem [resolvable:$true] %s65
      %71 = dma.hbm_to_vmem [thread:$0]  %s7, 512, %s66, [#allocation9], 128, 128, 8
    $region33: #{tpu_custom_call.1} parent=1 // pred_fallthru
      _
    // Predicated region
    $region34: #{tpu_custom_call.1} parent=1 // pred_check
      _
    $region35: #{tpu_custom_call.1} parent=1 // pred_check_branch
      %73 = sbr.rel (0) target = $region37
    $region36: #{tpu_custom_call.1} parent=1 // pred_region
      _
    $region37: #{tpu_custom_call.1} parent=1 // pred_fallthru
      _
    // Predicated region
    $region38: #{tpu_custom_call.1} parent=1 // pred_check
      _
    $region39: #{tpu_custom_call.1} parent=1 // pred_check_branch
      %75 = sbr.rel (0) target = $region41
    $region40: #{tpu_custom_call.1} parent=1 // pred_region
      %76 = dma.done [#allocation3], 32
    $region41: #{tpu_custom_call.1} parent=1 // pred_fallthru
      _
    // Predicated region
    $region42: #{tpu_custom_call.1} parent=1 // pred_check
      _
    $region43: #{tpu_custom_call.1} parent=1 // pred_check_branch
      %78 = sbr.rel (0) target = $region45
    $region44: #{tpu_custom_call.1} parent=1 // pred_region
      %79 = dma.done [#allocation6], 512
    $region45: #{tpu_custom_call.1} parent=1 // pred_fallthru
      _
    // Predicated region
    $region46: #{tpu_custom_call.1} parent=1 // pred_check
      _
    $region47: #{tpu_custom_call.1} parent=1 // pred_check_branch
      %81 = sbr.rel (0) target = $region49
    $region48: #{tpu_custom_call.1} parent=1 // pred_region
      %82 = dma.done [#allocation6], 1024
    $region49: #{tpu_custom_call.1} parent=1 // pred_fallthru
      _
    // Predicated region
    $region50: #{tpu_custom_call.1} parent=1 // pred_check
      _
    $region51: #{tpu_custom_call.1} parent=1 // pred_check_branch
      %84 = sbr.rel (0) target = $region53
    $region52: #{tpu_custom_call.1} parent=1 // pred_region
      %85 = dma.done [#allocation9], 512
    $region53: #{tpu_custom_call.1} parent=1 // pred_fallthru
      _
    %v86 = vld [vmem:[#allocation2] sm:$0x3]
    %v87 = vld [vmem:[%s1] sm:$0x1]
    %v88 = vld [vmem:[%s2] sm:$0x1]
    %v89 = vld [vmem:[#allocation5] sm:$0xff]
    %v90 = vld [vmem:[#allocation5 + $0x8] sm:$0xff]
    %v91 = vld [vmem:[#allocation5 + $0x10] sm:$0xff]
    %v92 = vld [vmem:[#allocation5 + $0x18] sm:$0xff]
    %v93 = vld [vmem:[%s4] sm:$0x1]
    %v94 = vld [vmem:[#allocation7] sm:$0xff]
    %v95 = vld [vmem:[#allocation7 + $0x8] sm:$0xff]
    %v96 = vld [vmem:[#allocation7 + $0x10] sm:$0xff]
    %v97 = vld [vmem:[#allocation7 + $0x18] sm:$0xff]
    %v98 = vld [vmem:[#allocation7 + $0x20] sm:$0xff]
    %v99 = vld [vmem:[#allocation7 + $0x28] sm:$0xff]
    %v100 = vld [vmem:[#allocation7 + $0x30] sm:$0xff]
    %v101 = vld [vmem:[#allocation7 + $0x38] sm:$0xff]
    %v102 = vld [vmem:[%s6] sm:$0x1]
    %104 = vset.pattern.permute.xlu0 0
    %105 = vperm.xlu0 %104, %v86
    %v106 = vpop.permute.xlu0 %105
    %v109 = vlaneseq
    %v110 = vshrl.u32 %v109, 7
    %v111 = vsub.s32 0, %v110
    %v112 = vrot.slane %v87, %v111
    %v114 = vmul.f32 %v106, %v112
    %v116 = vlaneseq
    %v117 = vshrl.u32 %v116, 7
    %v118 = vsub.s32 0, %v117
    %v119 = vrot.slane %v88, %v118
    %v121 = vadd.f32 %v114, %v119
    %v123 = vlaneseq
    %v124 = vshrl.u32 %v123, 7
    %v125 = vsub.s32 0, %v124
    %v126 = vrot.slane %v93, %v125
    %vm128 = vcmask 261120
    %v130 = vsel %vm128, 0.0, 0
    %132 = vmatprep.subr.mxu0 0.0
    %133 = vmatpush1.msra.mxu0 %v89
    %134 = vmatprep.subr.mxu0 0.0
    %135 = vmatpush1.msra.mxu0 %v90
    %136 = vmatprep.subr.mxu0 0.0
    %137 = vmatpush1.msra.mxu0 %v91
    %138 = vmatprep.subr.mxu0 0.0
    %139 = vmatpush1.msra.mxu0 %v92
    %140 = vmatprep.subr.mxu0 0.0
    %141 = vmatpush1.msra.mxu0 0.0
    %142 = vmatprep.subr.mxu0 0.0
    %143 = vmatpush1.msra.mxu0 0.0
    %144 = vmatprep.subr.mxu0 0.0
    %145 = vmatpush1.msra.mxu0 0.0
    %146 = vmatprep.subr.mxu0 0.0
    %147 = vmatpush1.msra.mxu0 0.0
    %148 = vmatprep.subr.mxu0 0.0
    %149 = vmatpush1.msra.mxu0 0.0
    %150 = vmatprep.subr.mxu0 0.0
    %151 = vmatpush1.msra.mxu0 0.0
    %152 = vmatprep.subr.mxu0 0.0
    %153 = vmatpush1.msra.mxu0 0.0
    %154 = vmatprep.subr.mxu0 0.0
    %155 = vmatpush1.msra.mxu0 0.0
    %156 = vmatprep.subr.mxu0 0.0
    %157 = vmatpush1.msra.mxu0 0.0
    %158 = vmatprep.subr.mxu0 0.0
    %159 = vmatpush1.msra.mxu0 0.0
    %160 = vmatprep.subr.mxu0 0.0
    %161 = vmatpush1.msra.mxu0 0.0
    %162 = vmatprep.subr.mxu0 0.0
    %163 = vmatpush1.msra.mxu0 0.0
    %164 = vmatprep.subr.mxu0 0.0
    %165 = vmatpush1.msra.mxu0 0.0
    %166 = vmatprep.subr.mxu0 0.0
    %167 = vmatpush1.msra.mxu0 0.0
    %168 = vmatprep.subr.mxu0 0.0
    %169 = vmatpush1.msra.mxu0 0.0
    %170 = vmatprep.subr.mxu0 0.0
    %171 = vmatpush1.msra.mxu0 0.0
    %172 = vmatprep.subr.mxu0 0.0
    %173 = vmatpush1.msra.mxu0 0.0
    %174 = vmatprep.subr.mxu0 0.0
    %175 = vmatpush1.msra.mxu0 0.0
    %176 = vmatprep.subr.mxu0 0.0
    %177 = vmatpush1.msra.mxu0 0.0
    %178 = vmatprep.subr.mxu0 0.0
    %179 = vmatpush1.msra.mxu0 0.0
    %180 = vmatprep.subr.mxu0 0.0
    %181 = vmatpush1.msra.mxu0 0.0
    %182 = vmatprep.subr.mxu0 0.0
    %183 = vmatpush1.msra.mxu0 0.0
    %184 = vmatprep.subr.mxu0 0.0
    %185 = vmatpush1.msra.mxu0 0.0
    %186 = vmatprep.subr.mxu0 0.0
    %187 = vmatpush1.msra.mxu0 0.0
    %188 = vmatprep.subr.mxu0 0.0
    %189 = vmatpush1.msra.mxu0 0.0
    %190 = vmatprep.subr.mxu0 0.0
    %191 = vmatpush1.msra.mxu0 0.0
    %192 = vmatprep.subr.mxu0 0.0
    %193 = vmatpush1.msra.mxu0 0.0
    %194 = vmatprep.subr.mxu0 0.0
    %195 = vmatpush1.msra.mxu0 0.0
    %196 = vmatprep.mubr.f32.mxu0 0.0
    %197 = vmatmul.mubr.f32.gmra.mrb[0].mxu0 %v130
    %v198 = vpop.f32.mrb[0].mxu0
    %v199 = vadd.f32 %v126, %v198
    %v200 = vpop.f32.mrb[0].mxu0
    %201 = vdwg.mxu0
    %v202 = vadd.f32 %v121, %v199
    %v203 = vxor.u32 %v202, 2147483648
    %v204 = vmul.f32 %v203, 1.442695
    %v205 = vpow.pop %v204
    %v206 = vadd.f32 %v205, 1.0
    %v207 = vrcp.pop %v206
    %v208 = vmul.f32 1.0, %v207
    %210 = vrot.lane.b32.xlu0 %v199, 64
    %v211 = vpop.permute.xlu0 %210
    %v213 = vmul.f32 %v208, %v211
    %215 = vrot.lane.b32.xlu0 %v213, 64
    %v216 = vpop.permute.xlu0 %215
    %v218 = vadd.f32 %v121, %v216
    %v219 = vtanh.pop %v218
    %v220 = vsub.f32 1.0, %v208
    %222 = vrot.lane.b32.xlu0 %v219, 96
    %v223 = vpop.permute.xlu0 %222
    %v225 = vmul.f32 %v220, %v223
    %v226 = vmul.f32 %v208, 0.0
    %v227 = vadd.f32 %v225, %v226
    %229 = vrot.lane.b32.xlu0 %v227, 96
    %v230 = vpop.permute.xlu0 %229
    %v232 = vsel %vm128, %v230, 0.0
    %v234 = vlaneseq
    %v235 = vshrl.u32 %v234, 7
    %v236 = vsub.s32 0, %v235
    %v237 = vrot.slane %v102, %v236
    %vm239 = vcmask 523264
    %v241 = vsel %vm239, %v232, 0
    %243 = vmatprep.subr.mxu0 0.0
    %244 = vmatpush1.msra.mxu0 %v94
    %245 = vmatprep.subr.mxu0 0.0
    %246 = vmatpush1.msra.mxu0 %v95
    %247 = vmatprep.subr.mxu0 0.0
    %248 = vmatpush1.msra.mxu0 %v96
    %249 = vmatprep.subr.mxu0 0.0
    %250 = vmatpush1.msra.mxu0 %v97
    %251 = vmatprep.subr.mxu0 0.0
    %252 = vmatpush1.msra.mxu0 %v98
    %253 = vmatprep.subr.mxu0 0.0
    %254 = vmatpush1.msra.mxu0 %v99
    %255 = vmatprep.subr.mxu0 0.0
    %256 = vmatpush1.msra.mxu0 %v100
    %257 = vmatprep.subr.mxu0 0.0
    %258 = vmatpush1.msra.mxu0 %v101
    %259 = vmatprep.subr.mxu0 0.0
    %260 = vmatpush1.msra.mxu0 0.0
    %261 = vmatprep.subr.mxu0 0.0
    %262 = vmatpush1.msra.mxu0 0.0
    %263 = vmatprep.subr.mxu0 0.0
    %264 = vmatpush1.msra.mxu0 0.0
    %265 = vmatprep.subr.mxu0 0.0
    %266 = vmatpush1.msra.mxu0 0.0
    %267 = vmatprep.subr.mxu0 0.0
    %268 = vmatpush1.msra.mxu0 0.0
    %269 = vmatprep.subr.mxu0 0.0
    %270 = vmatpush1.msra.mxu0 0.0
    %271 = vmatprep.subr.mxu0 0.0
    %272 = vmatpush1.msra.mxu0 0.0
    %273 = vmatprep.subr.mxu0 0.0
    %274 = vmatpush1.msra.mxu0 0.0
    %275 = vmatprep.subr.mxu0 0.0
    %276 = vmatpush1.msra.mxu0 0.0
    %277 = vmatprep.subr.mxu0 0.0
    %278 = vmatpush1.msra.mxu0 0.0
    %279 = vmatprep.subr.mxu0 0.0
    %280 = vmatpush1.msra.mxu0 0.0
    %281 = vmatprep.subr.mxu0 0.0
    %282 = vmatpush1.msra.mxu0 0.0
    %283 = vmatprep.subr.mxu0 0.0
    %284 = vmatpush1.msra.mxu0 0.0
    %285 = vmatprep.subr.mxu0 0.0
    %286 = vmatpush1.msra.mxu0 0.0
    %287 = vmatprep.subr.mxu0 0.0
    %288 = vmatpush1.msra.mxu0 0.0
    %289 = vmatprep.subr.mxu0 0.0
    %290 = vmatpush1.msra.mxu0 0.0
    %291 = vmatprep.subr.mxu0 0.0
    %292 = vmatpush1.msra.mxu0 0.0
    %293 = vmatprep.subr.mxu0 0.0
    %294 = vmatpush1.msra.mxu0 0.0
    %295 = vmatprep.subr.mxu0 0.0
    %296 = vmatpush1.msra.mxu0 0.0
    %297 = vmatprep.subr.mxu0 0.0
    %298 = vmatpush1.msra.mxu0 0.0
    %299 = vmatprep.subr.mxu0 0.0
    %300 = vmatpush1.msra.mxu0 0.0
    %301 = vmatprep.subr.mxu0 0.0
    %302 = vmatpush1.msra.mxu0 0.0
    %303 = vmatprep.subr.mxu0 0.0
    %304 = vmatpush1.msra.mxu0 0.0
    %305 = vmatprep.subr.mxu0 0.0
    %306 = vmatpush1.msra.mxu0 0.0
    %307 = vmatprep.mubr.f32.mxu0 0.0
    %308 = vmatmul.mubr.f32.gmra.mrb[0].mxu0 %v241
    %v309 = vpop.f32.mrb[0].mxu0
    %v310 = vadd.f32 %v237, %v309
    %v311 = vpop.f32.mrb[0].mxu0
    %312 = vdwg.mxu0
    %v313 = vxor.u32 %v310, 2147483648
    %v314 = vmul.f32 %v313, 1.442695
    %v315 = vpow.pop %v314
    %v316 = vadd.f32 %v315, 1.0
    %v317 = vrcp.pop %v316
    %v318 = vmul.f32 1.0, %v317
    %320 = vrot.lane.b32.xlu0 %v310, 32
    %v321 = vpop.permute.xlu0 %320
    %v323 = vmul.f32 %v318, %v321
    %325 = vrot.lane.b32.xlu0 %v323, 64
    %v326 = vpop.permute.xlu0 %325
    %v328 = vadd.f32 %v310, %v326
    %v329 = vtanh.pop %v328
    %v330 = vsub.f32 1.0, %v318
    %332 = vrot.lane.b32.xlu0 %v329, 96
    %v333 = vpop.permute.xlu0 %332
    %v335 = vmul.f32 %v330, %v333
    %v336 = vmul.f32 %v318, 0.0
    %v337 = vadd.f32 %v335, %v336
    %338 = vset.pattern.permute.xlu0 1
    %339 = vperm.xlu0 %338, %v86
    %v340 = vpop.permute.xlu0 %339
    %v342 = vmul.f32 %v340, %v112
    %v343 = vadd.f32 %v342, %v119
    %v344 = vsel %vm128, %v230, 0
    %346 = vmatprep.subr.mxu0 0.0
    %347 = vmatpush1.msra.mxu0 %v89
    %348 = vmatprep.subr.mxu0 0.0
    %349 = vmatpush1.msra.mxu0 %v90
    %350 = vmatprep.subr.mxu0 0.0
    %351 = vmatpush1.msra.mxu0 %v91
    %352 = vmatprep.subr.mxu0 0.0
    %353 = vmatpush1.msra.mxu0 %v92
    %354 = vmatprep.subr.mxu0 0.0
    %355 = vmatpush1.msra.mxu0 0.0
    %356 = vmatprep.subr.mxu0 0.0
    %357 = vmatpush1.msra.mxu0 0.0
    %358 = vmatprep.subr.mxu0 0.0
    %359 = vmatpush1.msra.mxu0 0.0
    %360 = vmatprep.subr.mxu0 0.0
    %361 = vmatpush1.msra.mxu0 0.0
    %362 = vmatprep.subr.mxu0 0.0
    %363 = vmatpush1.msra.mxu0 0.0
    %364 = vmatprep.subr.mxu0 0.0
    %365 = vmatpush1.msra.mxu0 0.0
    %366 = vmatprep.subr.mxu0 0.0
    %367 = vmatpush1.msra.mxu0 0.0
    %368 = vmatprep.subr.mxu0 0.0
    %369 = vmatpush1.msra.mxu0 0.0
    %370 = vmatprep.subr.mxu0 0.0
    %371 = vmatpush1.msra.mxu0 0.0
    %372 = vmatprep.subr.mxu0 0.0
    %373 = vmatpush1.msra.mxu0 0.0
    %374 = vmatprep.subr.mxu0 0.0
    %375 = vmatpush1.msra.mxu0 0.0
    %376 = vmatprep.subr.mxu0 0.0
    %377 = vmatpush1.msra.mxu0 0.0
    %378 = vmatprep.subr.mxu0 0.0
    %379 = vmatpush1.msra.mxu0 0.0
    %380 = vmatprep.subr.mxu0 0.0
    %381 = vmatpush1.msra.mxu0 0.0
    %382 = vmatprep.subr.mxu0 0.0
    %383 = vmatpush1.msra.mxu0 0.0
    %384 = vmatprep.subr.mxu0 0.0
    %385 = vmatpush1.msra.mxu0 0.0
    %386 = vmatprep.subr.mxu0 0.0
    %387 = vmatpush1.msra.mxu0 0.0
    %388 = vmatprep.subr.mxu0 0.0
    %389 = vmatpush1.msra.mxu0 0.0
    %390 = vmatprep.subr.mxu0 0.0
    %391 = vmatpush1.msra.mxu0 0.0
    %392 = vmatprep.subr.mxu0 0.0
    %393 = vmatpush1.msra.mxu0 0.0
    %394 = vmatprep.subr.mxu0 0.0
    %395 = vmatpush1.msra.mxu0 0.0
    %396 = vmatprep.subr.mxu0 0.0
    %397 = vmatpush1.msra.mxu0 0.0
    %398 = vmatprep.subr.mxu0 0.0
    %399 = vmatpush1.msra.mxu0 0.0
    %400 = vmatprep.subr.mxu0 0.0
    %401 = vmatpush1.msra.mxu0 0.0
    %402 = vmatprep.subr.mxu0 0.0
    %403 = vmatpush1.msra.mxu0 0.0
    %404 = vmatprep.subr.mxu0 0.0
    %405 = vmatpush1.msra.mxu0 0.0
    %406 = vmatprep.subr.mxu0 0.0
    %407 = vmatpush1.msra.mxu0 0.0
    %408 = vmatprep.subr.mxu0 0.0
    %409 = vmatpush1.msra.mxu0 0.0
    %410 = vmatprep.mubr.f32.mxu0 0.0
    %411 = vmatmul.mubr.f32.gmra.mrb[0].mxu0 %v344
    %v412 = vpop.f32.mrb[0].mxu0
    %v413 = vadd.f32 %v126, %v412
    %v414 = vpop.f32.mrb[0].mxu0
    %415 = vdwg.mxu0
    %v416 = vadd.f32 %v343, %v413
    %v417 = vxor.u32 %v416, 2147483648
    %v418 = vmul.f32 %v417, 1.442695
    %v419 = vpow.pop %v418
    %v420 = vadd.f32 %v419, 1.0
    %v421 = vrcp.pop %v420
    %v422 = vmul.f32 1.0, %v421
    %424 = vrot.lane.b32.xlu0 %v413, 64
    %v425 = vpop.permute.xlu0 %424
    %v427 = vmul.f32 %v422, %v425
    %429 = vrot.lane.b32.xlu0 %v427, 64
    %v430 = vpop.permute.xlu0 %429
    %v432 = vadd.f32 %v343, %v430
    %v433 = vtanh.pop %v432
    %v434 = vsub.f32 1.0, %v422
    %436 = vrot.lane.b32.xlu0 %v433, 96
    %v437 = vpop.permute.xlu0 %436
    %v439 = vmul.f32 %v434, %v437
    %v440 = vmul.f32 %v422, %v227
    %v441 = vadd.f32 %v439, %v440
    %443 = vrot.lane.b32.xlu0 %v441, 96
    %v444 = vpop.permute.xlu0 %443
    %v446 = vsel %vm128, %v444, %v337
    %v448 = vsel %vm239, %v446, 0
    %450 = vmatprep.subr.mxu0 0.0
    %451 = vmatpush1.msra.mxu0 %v94
    %452 = vmatprep.subr.mxu0 0.0
    %453 = vmatpush1.msra.mxu0 %v95
    %454 = vmatprep.subr.mxu0 0.0
    %455 = vmatpush1.msra.mxu0 %v96
    %456 = vmatprep.subr.mxu0 0.0
    %457 = vmatpush1.msra.mxu0 %v97
    %458 = vmatprep.subr.mxu0 0.0
    %459 = vmatpush1.msra.mxu0 %v98
    %460 = vmatprep.subr.mxu0 0.0
    %461 = vmatpush1.msra.mxu0 %v99
    %462 = vmatprep.subr.mxu0 0.0
    %463 = vmatpush1.msra.mxu0 %v100
    %464 = vmatprep.subr.mxu0 0.0
    %465 = vmatpush1.msra.mxu0 %v101
    %466 = vmatprep.subr.mxu0 0.0
    %467 = vmatpush1.msra.mxu0 0.0
    %468 = vmatprep.subr.mxu0 0.0
    %469 = vmatpush1.msra.mxu0 0.0
    %470 = vmatprep.subr.mxu0 0.0
    %471 = vmatpush1.msra.mxu0 0.0
    %472 = vmatprep.subr.mxu0 0.0
    %473 = vmatpush1.msra.mxu0 0.0
    %474 = vmatprep.subr.mxu0 0.0
    %475 = vmatpush1.msra.mxu0 0.0
    %476 = vmatprep.subr.mxu0 0.0
    %477 = vmatpush1.msra.mxu0 0.0
    %478 = vmatprep.subr.mxu0 0.0
    %479 = vmatpush1.msra.mxu0 0.0
    %480 = vmatprep.subr.mxu0 0.0
    %481 = vmatpush1.msra.mxu0 0.0
    %482 = vmatprep.subr.mxu0 0.0
    %483 = vmatpush1.msra.mxu0 0.0
    %484 = vmatprep.subr.mxu0 0.0
    %485 = vmatpush1.msra.mxu0 0.0
    %486 = vmatprep.subr.mxu0 0.0
    %487 = vmatpush1.msra.mxu0 0.0
    %488 = vmatprep.subr.mxu0 0.0
    %489 = vmatpush1.msra.mxu0 0.0
    %490 = vmatprep.subr.mxu0 0.0
    %491 = vmatpush1.msra.mxu0 0.0
    %492 = vmatprep.subr.mxu0 0.0
    %493 = vmatpush1.msra.mxu0 0.0
    %494 = vmatprep.subr.mxu0 0.0
    %495 = vmatpush1.msra.mxu0 0.0
    %496 = vmatprep.subr.mxu0 0.0
    %497 = vmatpush1.msra.mxu0 0.0
    %498 = vmatprep.subr.mxu0 0.0
    %499 = vmatpush1.msra.mxu0 0.0
    %500 = vmatprep.subr.mxu0 0.0
    %501 = vmatpush1.msra.mxu0 0.0
    %502 = vmatprep.subr.mxu0 0.0
    %503 = vmatpush1.msra.mxu0 0.0
    %504 = vmatprep.subr.mxu0 0.0
    %505 = vmatpush1.msra.mxu0 0.0
    %506 = vmatprep.subr.mxu0 0.0
    %507 = vmatpush1.msra.mxu0 0.0
    %508 = vmatprep.subr.mxu0 0.0
    %509 = vmatpush1.msra.mxu0 0.0
    %510 = vmatprep.subr.mxu0 0.0
    %511 = vmatpush1.msra.mxu0 0.0
    %512 = vmatprep.subr.mxu0 0.0
    %513 = vmatpush1.msra.mxu0 0.0
    %514 = vmatprep.mubr.f32.mxu0 0.0
    %515 = vmatmul.mubr.f32.gmra.mrb[0].mxu0 %v448
    %v516 = vpop.f32.mrb[0].mxu0
    %v517 = vadd.f32 %v237, %v516
    %v518 = vpop.f32.mrb[0].mxu0
    %519 = vdwg.mxu0
    %v520 = vxor.u32 %v517, 2147483648
    %v521 = vmul.f32 %v520, 1.442695
    %v522 = vpow.pop %v521
    %v523 = vadd.f32 %v522, 1.0
    %v524 = vrcp.pop %v523
    %v525 = vmul.f32 1.0, %v524
    %527 = vrot.lane.b32.xlu0 %v517, 32
    %v528 = vpop.permute.xlu0 %527
    %v530 = vmul.f32 %v525, %v528
    %532 = vrot.lane.b32.xlu0 %v530, 64
    %v533 = vpop.permute.xlu0 %532
    %v535 = vadd.f32 %v517, %v533
    %v536 = vtanh.pop %v535
    %v537 = vsub.f32 1.0, %v525
    %539 = vrot.lane.b32.xlu0 %v536, 96
    %v540 = vpop.permute.xlu0 %539
    %v542 = vmul.f32 %v537, %v540
    %v543 = vmul.f32 %v525, %v337
    %v544 = vadd.f32 %v542, %v543
    %545 = vset.pattern.permute.xlu0 2
    %546 = vperm.xlu0 %545, %v86
    %v547 = vpop.permute.xlu0 %546
    %v549 = vmul.f32 %v547, %v112
    %v550 = vadd.f32 %v549, %v119
    %v551 = vsel %vm128, %v444, 0
    %553 = vmatprep.subr.mxu0 0.0
    %554 = vmatpush1.msra.mxu0 %v89
    %555 = vmatprep.subr.mxu0 0.0
    %556 = vmatpush1.msra.mxu0 %v90
    %557 = vmatprep.subr.mxu0 0.0
    %558 = vmatpush1.msra.mxu0 %v91
    %559 = vmatprep.subr.mxu0 0.0
    %560 = vmatpush1.msra.mxu0 %v92
    %561 = vmatprep.subr.mxu0 0.0
    %562 = vmatpush1.msra.mxu0 0.0
    %563 = vmatprep.subr.mxu0 0.0
    %564 = vmatpush1.msra.mxu0 0.0
    %565 = vmatprep.subr.mxu0 0.0
    %566 = vmatpush1.msra.mxu0 0.0
    %567 = vmatprep.subr.mxu0 0.0
    %568 = vmatpush1.msra.mxu0 0.0
    %569 = vmatprep.subr.mxu0 0.0
    %570 = vmatpush1.msra.mxu0 0.0
    %571 = vmatprep.subr.mxu0 0.0
    %572 = vmatpush1.msra.mxu0 0.0
    %573 = vmatprep.subr.mxu0 0.0
    %574 = vmatpush1.msra.mxu0 0.0
    %575 = vmatprep.subr.mxu0 0.0
    %576 = vmatpush1.msra.mxu0 0.0
    %577 = vmatprep.subr.mxu0 0.0
    %578 = vmatpush1.msra.mxu0 0.0
    %579 = vmatprep.subr.mxu0 0.0
    %580 = vmatpush1.msra.mxu0 0.0
    %581 = vmatprep.subr.mxu0 0.0
    %582 = vmatpush1.msra.mxu0 0.0
    %583 = vmatprep.subr.mxu0 0.0
    %584 = vmatpush1.msra.mxu0 0.0
    %585 = vmatprep.subr.mxu0 0.0
    %586 = vmatpush1.msra.mxu0 0.0
    %587 = vmatprep.subr.mxu0 0.0
    %588 = vmatpush1.msra.mxu0 0.0
    %589 = vmatprep.subr.mxu0 0.0
    %590 = vmatpush1.msra.mxu0 0.0
    %591 = vmatprep.subr.mxu0 0.0
    %592 = vmatpush1.msra.mxu0 0.0
    %593 = vmatprep.subr.mxu0 0.0
    %594 = vmatpush1.msra.mxu0 0.0
    %595 = vmatprep.subr.mxu0 0.0
    %596 = vmatpush1.msra.mxu0 0.0
    %597 = vmatprep.subr.mxu0 0.0
    %598 = vmatpush1.msra.mxu0 0.0
    %599 = vmatprep.subr.mxu0 0.0
    %600 = vmatpush1.msra.mxu0 0.0
    %601 = vmatprep.subr.mxu0 0.0
    %602 = vmatpush1.msra.mxu0 0.0
    %603 = vmatprep.subr.mxu0 0.0
    %604 = vmatpush1.msra.mxu0 0.0
    %605 = vmatprep.subr.mxu0 0.0
    %606 = vmatpush1.msra.mxu0 0.0
    %607 = vmatprep.subr.mxu0 0.0
    %608 = vmatpush1.msra.mxu0 0.0
    %609 = vmatprep.subr.mxu0 0.0
    %610 = vmatpush1.msra.mxu0 0.0
    %611 = vmatprep.subr.mxu0 0.0
    %612 = vmatpush1.msra.mxu0 0.0
    %613 = vmatprep.subr.mxu0 0.0
    %614 = vmatpush1.msra.mxu0 0.0
    %615 = vmatprep.subr.mxu0 0.0
    %616 = vmatpush1.msra.mxu0 0.0
    %617 = vmatprep.mubr.f32.mxu0 0.0
    %618 = vmatmul.mubr.f32.gmra.mrb[0].mxu0 %v551
    %v619 = vpop.f32.mrb[0].mxu0
    %v620 = vadd.f32 %v126, %v619
    %v621 = vpop.f32.mrb[0].mxu0
    %622 = vdwg.mxu0
    %v623 = vadd.f32 %v550, %v620
    %v624 = vxor.u32 %v623, 2147483648
    %v625 = vmul.f32 %v624, 1.442695
    %v626 = vpow.pop %v625
    %v627 = vadd.f32 %v626, 1.0
    %v628 = vrcp.pop %v627
    %v629 = vmul.f32 1.0, %v628
    %631 = vrot.lane.b32.xlu0 %v620, 64
    %v632 = vpop.permute.xlu0 %631
    %v634 = vmul.f32 %v629, %v632
    %636 = vrot.lane.b32.xlu0 %v634, 64
    %v637 = vpop.permute.xlu0 %636
    %v639 = vadd.f32 %v550, %v637
    %v640 = vtanh.pop %v639
    %v641 = vsub.f32 1.0, %v629
    %643 = vrot.lane.b32.xlu0 %v640, 96
    %v644 = vpop.permute.xlu0 %643
    %v646 = vmul.f32 %v641, %v644
    %v647 = vmul.f32 %v629, %v441
    %v648 = vadd.f32 %v646, %v647
    %650 = vrot.lane.b32.xlu0 %v648, 96
    %v651 = vpop.permute.xlu0 %650
    %v653 = vsel %vm128, %v651, %v544
    %v655 = vsel %vm239, %v653, 0
    %657 = vmatprep.subr.mxu0 0.0
    %658 = vmatpush1.msra.mxu0 %v94
    %659 = vmatprep.subr.mxu0 0.0
    %660 = vmatpush1.msra.mxu0 %v95
    %661 = vmatprep.subr.mxu0 0.0
    %662 = vmatpush1.msra.mxu0 %v96
    %663 = vmatprep.subr.mxu0 0.0
    %664 = vmatpush1.msra.mxu0 %v97
    %665 = vmatprep.subr.mxu0 0.0
    %666 = vmatpush1.msra.mxu0 %v98
    %667 = vmatprep.subr.mxu0 0.0
    %668 = vmatpush1.msra.mxu0 %v99
    %669 = vmatprep.subr.mxu0 0.0
    %670 = vmatpush1.msra.mxu0 %v100
    %671 = vmatprep.subr.mxu0 0.0
    %672 = vmatpush1.msra.mxu0 %v101
    %673 = vmatprep.subr.mxu0 0.0
    %674 = vmatpush1.msra.mxu0 0.0
    %675 = vmatprep.subr.mxu0 0.0
    %676 = vmatpush1.msra.mxu0 0.0
    %677 = vmatprep.subr.mxu0 0.0
    %678 = vmatpush1.msra.mxu0 0.0
    %679 = vmatprep.subr.mxu0 0.0
    %680 = vmatpush1.msra.mxu0 0.0
    %681 = vmatprep.subr.mxu0 0.0
    %682 = vmatpush1.msra.mxu0 0.0
    %683 = vmatprep.subr.mxu0 0.0
    %684 = vmatpush1.msra.mxu0 0.0
    %685 = vmatprep.subr.mxu0 0.0
    %686 = vmatpush1.msra.mxu0 0.0
    %687 = vmatprep.subr.mxu0 0.0
    %688 = vmatpush1.msra.mxu0 0.0
    %689 = vmatprep.subr.mxu0 0.0
    %690 = vmatpush1.msra.mxu0 0.0
    %691 = vmatprep.subr.mxu0 0.0
    %692 = vmatpush1.msra.mxu0 0.0
    %693 = vmatprep.subr.mxu0 0.0
    %694 = vmatpush1.msra.mxu0 0.0
    %695 = vmatprep.subr.mxu0 0.0
    %696 = vmatpush1.msra.mxu0 0.0
    %697 = vmatprep.subr.mxu0 0.0
    %698 = vmatpush1.msra.mxu0 0.0
    %699 = vmatprep.subr.mxu0 0.0
    %700 = vmatpush1.msra.mxu0 0.0
    %701 = vmatprep.subr.mxu0 0.0
    %702 = vmatpush1.msra.mxu0 0.0
    %703 = vmatprep.subr.mxu0 0.0
    %704 = vmatpush1.msra.mxu0 0.0
    %705 = vmatprep.subr.mxu0 0.0
    %706 = vmatpush1.msra.mxu0 0.0
    %707 = vmatprep.subr.mxu0 0.0
    %708 = vmatpush1.msra.mxu0 0.0
    %709 = vmatprep.subr.mxu0 0.0
    %710 = vmatpush1.msra.mxu0 0.0
    %711 = vmatprep.subr.mxu0 0.0
    %712 = vmatpush1.msra.mxu0 0.0
    %713 = vmatprep.subr.mxu0 0.0
    %714 = vmatpush1.msra.mxu0 0.0
    %715 = vmatprep.subr.mxu0 0.0
    %716 = vmatpush1.msra.mxu0 0.0
    %717 = vmatprep.subr.mxu0 0.0
    %718 = vmatpush1.msra.mxu0 0.0
    %719 = vmatprep.subr.mxu0 0.0
    %720 = vmatpush1.msra.mxu0 0.0
    %721 = vmatprep.mubr.f32.mxu0 0.0
    %722 = vmatmul.mubr.f32.gmra.mrb[0].mxu0 %v655
    %v723 = vpop.f32.mrb[0].mxu0
    %v724 = vadd.f32 %v237, %v723
    %v725 = vpop.f32.mrb[0].mxu0
    %726 = vdwg.mxu0
    %v727 = vxor.u32 %v724, 2147483648
    %v728 = vmul.f32 %v727, 1.442695
    %v729 = vpow.pop %v728
    %v730 = vadd.f32 %v729, 1.0
    %v731 = vrcp.pop %v730
    %v732 = vmul.f32 1.0, %v731
    %734 = vrot.lane.b32.xlu0 %v724, 32
    %v735 = vpop.permute.xlu0 %734
    %v737 = vmul.f32 %v732, %v735
    %739 = vrot.lane.b32.xlu0 %v737, 64
    %v740 = vpop.permute.xlu0 %739
    %v742 = vadd.f32 %v724, %v740
    %v743 = vtanh.pop %v742
    %v744 = vsub.f32 1.0, %v732
    %746 = vrot.lane.b32.xlu0 %v743, 96
    %v747 = vpop.permute.xlu0 %746
    %v749 = vmul.f32 %v744, %v747
    %v750 = vmul.f32 %v732, %v544
    %v751 = vadd.f32 %v749, %v750
    %752 = vset.pattern.permute.xlu0 3
    %753 = vperm.xlu0 %752, %v86
    %v754 = vpop.permute.xlu0 %753
    %v756 = vmul.f32 %v754, %v112
    %v757 = vadd.f32 %v756, %v119
    %v758 = vsel %vm128, %v651, 0
    %760 = vmatprep.subr.mxu0 0.0
    %761 = vmatpush1.msra.mxu0 %v89
    %762 = vmatprep.subr.mxu0 0.0
    %763 = vmatpush1.msra.mxu0 %v90
    %764 = vmatprep.subr.mxu0 0.0
    %765 = vmatpush1.msra.mxu0 %v91
    %766 = vmatprep.subr.mxu0 0.0
    %767 = vmatpush1.msra.mxu0 %v92
    %768 = vmatprep.subr.mxu0 0.0
    %769 = vmatpush1.msra.mxu0 0.0
    %770 = vmatprep.subr.mxu0 0.0
    %771 = vmatpush1.msra.mxu0 0.0
    %772 = vmatprep.subr.mxu0 0.0
    %773 = vmatpush1.msra.mxu0 0.0
    %774 = vmatprep.subr.mxu0 0.0
    %775 = vmatpush1.msra.mxu0 0.0
    %776 = vmatprep.subr.mxu0 0.0
    %777 = vmatpush1.msra.mxu0 0.0
    %778 = vmatprep.subr.mxu0 0.0
    %779 = vmatpush1.msra.mxu0 0.0
    %780 = vmatprep.subr.mxu0 0.0
    %781 = vmatpush1.msra.mxu0 0.0
    %782 = vmatprep.subr.mxu0 0.0
    %783 = vmatpush1.msra.mxu0 0.0
    %784 = vmatprep.subr.mxu0 0.0
    %785 = vmatpush1.msra.mxu0 0.0
    %786 = vmatprep.subr.mxu0 0.0
    %787 = vmatpush1.msra.mxu0 0.0
    %788 = vmatprep.subr.mxu0 0.0
    %789 = vmatpush1.msra.mxu0 0.0
    %790 = vmatprep.subr.mxu0 0.0
    %791 = vmatpush1.msra.mxu0 0.0
    %792 = vmatprep.subr.mxu0 0.0
    %793 = vmatpush1.msra.mxu0 0.0
    %794 = vmatprep.subr.mxu0 0.0
    %795 = vmatpush1.msra.mxu0 0.0
    %796 = vmatprep.subr.mxu0 0.0
    %797 = vmatpush1.msra.mxu0 0.0
    %798 = vmatprep.subr.mxu0 0.0
    %799 = vmatpush1.msra.mxu0 0.0
    %800 = vmatprep.subr.mxu0 0.0
    %801 = vmatpush1.msra.mxu0 0.0
    %802 = vmatprep.subr.mxu0 0.0
    %803 = vmatpush1.msra.mxu0 0.0
    %804 = vmatprep.subr.mxu0 0.0
    %805 = vmatpush1.msra.mxu0 0.0
    %806 = vmatprep.subr.mxu0 0.0
    %807 = vmatpush1.msra.mxu0 0.0
    %808 = vmatprep.subr.mxu0 0.0
    %809 = vmatpush1.msra.mxu0 0.0
    %810 = vmatprep.subr.mxu0 0.0
    %811 = vmatpush1.msra.mxu0 0.0
    %812 = vmatprep.subr.mxu0 0.0
    %813 = vmatpush1.msra.mxu0 0.0
    %814 = vmatprep.subr.mxu0 0.0
    %815 = vmatpush1.msra.mxu0 0.0
    %816 = vmatprep.subr.mxu0 0.0
    %817 = vmatpush1.msra.mxu0 0.0
    %818 = vmatprep.subr.mxu0 0.0
    %819 = vmatpush1.msra.mxu0 0.0
    %820 = vmatprep.subr.mxu0 0.0
    %821 = vmatpush1.msra.mxu0 0.0
    %822 = vmatprep.subr.mxu0 0.0
    %823 = vmatpush1.msra.mxu0 0.0
    %824 = vmatprep.mubr.f32.mxu0 0.0
    %825 = vmatmul.mubr.f32.gmra.mrb[0].mxu0 %v758
    %v826 = vpop.f32.mrb[0].mxu0
    %v827 = vadd.f32 %v126, %v826
    %v828 = vpop.f32.mrb[0].mxu0
    %829 = vdwg.mxu0
    %v830 = vadd.f32 %v757, %v827
    %v831 = vxor.u32 %v830, 2147483648
    %v832 = vmul.f32 %v831, 1.442695
    %v833 = vpow.pop %v832
    %v834 = vadd.f32 %v833, 1.0
    %v835 = vrcp.pop %v834
    %v836 = vmul.f32 1.0, %v835
    %838 = vrot.lane.b32.xlu0 %v827, 64
    %v839 = vpop.permute.xlu0 %838
    %v841 = vmul.f32 %v836, %v839
    %843 = vrot.lane.b32.xlu0 %v841, 64
    %v844 = vpop.permute.xlu0 %843
    %v846 = vadd.f32 %v757, %v844
    %v847 = vtanh.pop %v846
    %v848 = vsub.f32 1.0, %v836
    %850 = vrot.lane.b32.xlu0 %v847, 96
    %v851 = vpop.permute.xlu0 %850
    %v853 = vmul.f32 %v848, %v851
    %v854 = vmul.f32 %v836, %v648
    %v855 = vadd.f32 %v853, %v854
    %857 = vrot.lane.b32.xlu0 %v855, 96
    %v858 = vpop.permute.xlu0 %857
    %v860 = vsel %vm128, %v858, %v751
    %v862 = vsel %vm239, %v860, 0
    %864 = vmatprep.subr.mxu0 0.0
    %865 = vmatpush1.msra.mxu0 %v94
    %866 = vmatprep.subr.mxu0 0.0
    %867 = vmatpush1.msra.mxu0 %v95
    %868 = vmatprep.subr.mxu0 0.0
    %869 = vmatpush1.msra.mxu0 %v96
    %870 = vmatprep.subr.mxu0 0.0
    %871 = vmatpush1.msra.mxu0 %v97
    %872 = vmatprep.subr.mxu0 0.0
    %873 = vmatpush1.msra.mxu0 %v98
    %874 = vmatprep.subr.mxu0 0.0
    %875 = vmatpush1.msra.mxu0 %v99
    %876 = vmatprep.subr.mxu0 0.0
    %877 = vmatpush1.msra.mxu0 %v100
    %878 = vmatprep.subr.mxu0 0.0
    %879 = vmatpush1.msra.mxu0 %v101
    %880 = vmatprep.subr.mxu0 0.0
    %881 = vmatpush1.msra.mxu0 0.0
    %882 = vmatprep.subr.mxu0 0.0
    %883 = vmatpush1.msra.mxu0 0.0
    %884 = vmatprep.subr.mxu0 0.0
    %885 = vmatpush1.msra.mxu0 0.0
    %886 = vmatprep.subr.mxu0 0.0
    %887 = vmatpush1.msra.mxu0 0.0
    %888 = vmatprep.subr.mxu0 0.0
    %889 = vmatpush1.msra.mxu0 0.0
    %890 = vmatprep.subr.mxu0 0.0
    %891 = vmatpush1.msra.mxu0 0.0
    %892 = vmatprep.subr.mxu0 0.0
    %893 = vmatpush1.msra.mxu0 0.0
    %894 = vmatprep.subr.mxu0 0.0
    %895 = vmatpush1.msra.mxu0 0.0
    %896 = vmatprep.subr.mxu0 0.0
    %897 = vmatpush1.msra.mxu0 0.0
    %898 = vmatprep.subr.mxu0 0.0
    %899 = vmatpush1.msra.mxu0 0.0
    %900 = vmatprep.subr.mxu0 0.0
    %901 = vmatpush1.msra.mxu0 0.0
    %902 = vmatprep.subr.mxu0 0.0
    %903 = vmatpush1.msra.mxu0 0.0
    %904 = vmatprep.subr.mxu0 0.0
    %905 = vmatpush1.msra.mxu0 0.0
    %906 = vmatprep.subr.mxu0 0.0
    %907 = vmatpush1.msra.mxu0 0.0
    %908 = vmatprep.subr.mxu0 0.0
    %909 = vmatpush1.msra.mxu0 0.0
    %910 = vmatprep.subr.mxu0 0.0
    %911 = vmatpush1.msra.mxu0 0.0
    %912 = vmatprep.subr.mxu0 0.0
    %913 = vmatpush1.msra.mxu0 0.0
    %914 = vmatprep.subr.mxu0 0.0
    %915 = vmatpush1.msra.mxu0 0.0
    %916 = vmatprep.subr.mxu0 0.0
    %917 = vmatpush1.msra.mxu0 0.0
    %918 = vmatprep.subr.mxu0 0.0
    %919 = vmatpush1.msra.mxu0 0.0
    %920 = vmatprep.subr.mxu0 0.0
    %921 = vmatpush1.msra.mxu0 0.0
    %922 = vmatprep.subr.mxu0 0.0
    %923 = vmatpush1.msra.mxu0 0.0
    %924 = vmatprep.subr.mxu0 0.0
    %925 = vmatpush1.msra.mxu0 0.0
    %926 = vmatprep.subr.mxu0 0.0
    %927 = vmatpush1.msra.mxu0 0.0
    %928 = vmatprep.mubr.f32.mxu0 0.0
    %929 = vmatmul.mubr.f32.gmra.mrb[0].mxu0 %v862
    %v930 = vpop.f32.mrb[0].mxu0
    %v931 = vadd.f32 %v237, %v930
    %v932 = vpop.f32.mrb[0].mxu0
    %933 = vdwg.mxu0
    %v934 = vxor.u32 %v931, 2147483648
    %v935 = vmul.f32 %v934, 1.442695
    %v936 = vpow.pop %v935
    %v937 = vadd.f32 %v936, 1.0
    %v938 = vrcp.pop %v937
    %v939 = vmul.f32 1.0, %v938
    %941 = vrot.lane.b32.xlu0 %v931, 32
    %v942 = vpop.permute.xlu0 %941
    %v944 = vmul.f32 %v939, %v942
    %946 = vrot.lane.b32.xlu0 %v944, 64
    %v947 = vpop.permute.xlu0 %946
    %v949 = vadd.f32 %v931, %v947
    %v950 = vtanh.pop %v949
    %v951 = vsub.f32 1.0, %v939
    %953 = vrot.lane.b32.xlu0 %v950, 96
    %v954 = vpop.permute.xlu0 %953
    %v956 = vmul.f32 %v951, %v954
    %v957 = vmul.f32 %v939, %v751
    %v958 = vadd.f32 %v956, %v957
    %959 = vset.pattern.permute.xlu0 4
    %960 = vperm.xlu0 %959, %v86
    %v961 = vpop.permute.xlu0 %960
    %v963 = vmul.f32 %v961, %v112
    %v964 = vadd.f32 %v963, %v119
    %v965 = vsel %vm128, %v858, 0
    %967 = vmatprep.subr.mxu0 0.0
    %968 = vmatpush1.msra.mxu0 %v89
    %969 = vmatprep.subr.mxu0 0.0
    %970 = vmatpush1.msra.mxu0 %v90
    %971 = vmatprep.subr.mxu0 0.0
    %972 = vmatpush1.msra.mxu0 %v91
    %973 = vmatprep.subr.mxu0 0.0
    %974 = vmatpush1.msra.mxu0 %v92
    %975 = vmatprep.subr.mxu0 0.0
    %976 = vmatpush1.msra.mxu0 0.0
    %977 = vmatprep.subr.mxu0 0.0
    %978 = vmatpush1.msra.mxu0 0.0
    %979 = vmatprep.subr.mxu0 0.0
    %980 = vmatpush1.msra.mxu0 0.0
    %981 = vmatprep.subr.mxu0 0.0
    %982 = vmatpush1.msra.mxu0 0.0
    %983 = vmatprep.subr.mxu0 0.0
    %984 = vmatpush1.msra.mxu0 0.0
    %985 = vmatprep.subr.mxu0 0.0
    %986 = vmatpush1.msra.mxu0 0.0
    %987 = vmatprep.subr.mxu0 0.0
    %988 = vmatpush1.msra.mxu0 0.0
    %989 = vmatprep.subr.mxu0 0.0
    %990 = vmatpush1.msra.mxu0 0.0
    %991 = vmatprep.subr.mxu0 0.0
    %992 = vmatpush1.msra.mxu0 0.0
    %993 = vmatprep.subr.mxu0 0.0
    %994 = vmatpush1.msra.mxu0 0.0
    %995 = vmatprep.subr.mxu0 0.0
    %996 = vmatpush1.msra.mxu0 0.0
    %997 = vmatprep.subr.mxu0 0.0
    %998 = vmatpush1.msra.mxu0 0.0
    %999 = vmatprep.subr.mxu0 0.0
    %1000 = vmatpush1.msra.mxu0 0.0
    %1001 = vmatprep.subr.mxu0 0.0
    %1002 = vmatpush1.msra.mxu0 0.0
    %1003 = vmatprep.subr.mxu0 0.0
    %1004 = vmatpush1.msra.mxu0 0.0
    %1005 = vmatprep.subr.mxu0 0.0
    %1006 = vmatpush1.msra.mxu0 0.0
    %1007 = vmatprep.subr.mxu0 0.0
    %1008 = vmatpush1.msra.mxu0 0.0
    %1009 = vmatprep.subr.mxu0 0.0
    %1010 = vmatpush1.msra.mxu0 0.0
    %1011 = vmatprep.subr.mxu0 0.0
    %1012 = vmatpush1.msra.mxu0 0.0
    %1013 = vmatprep.subr.mxu0 0.0
    %1014 = vmatpush1.msra.mxu0 0.0
    %1015 = vmatprep.subr.mxu0 0.0
    %1016 = vmatpush1.msra.mxu0 0.0
    %1017 = vmatprep.subr.mxu0 0.0
    %1018 = vmatpush1.msra.mxu0 0.0
    %1019 = vmatprep.subr.mxu0 0.0
    %1020 = vmatpush1.msra.mxu0 0.0
    %1021 = vmatprep.subr.mxu0 0.0
    %1022 = vmatpush1.msra.mxu0 0.0
    %1023 = vmatprep.subr.mxu0 0.0
    %1024 = vmatpush1.msra.mxu0 0.0
    %1025 = vmatprep.subr.mxu0 0.0
    %1026 = vmatpush1.msra.mxu0 0.0
    %1027 = vmatprep.subr.mxu0 0.0
    %1028 = vmatpush1.msra.mxu0 0.0
    %1029 = vmatprep.subr.mxu0 0.0
    %1030 = vmatpush1.msra.mxu0 0.0
    %1031 = vmatprep.mubr.f32.mxu0 0.0
    %1032 = vmatmul.mubr.f32.gmra.mrb[0].mxu0 %v965
    %v1033 = vpop.f32.mrb[0].mxu0
    %v1034 = vadd.f32 %v126, %v1033
    %v1035 = vpop.f32.mrb[0].mxu0
    %1036 = vdwg.mxu0
    %v1037 = vadd.f32 %v964, %v1034
    %v1038 = vxor.u32 %v1037, 2147483648
    %v1039 = vmul.f32 %v1038, 1.442695
    %v1040 = vpow.pop %v1039
    %v1041 = vadd.f32 %v1040, 1.0
    %v1042 = vrcp.pop %v1041
    %v1043 = vmul.f32 1.0, %v1042
    %1045 = vrot.lane.b32.xlu0 %v1034, 64
    %v1046 = vpop.permute.xlu0 %1045
    %v1048 = vmul.f32 %v1043, %v1046
    %1050 = vrot.lane.b32.xlu0 %v1048, 64
    %v1051 = vpop.permute.xlu0 %1050
    %v1053 = vadd.f32 %v964, %v1051
    %v1054 = vtanh.pop %v1053
    %v1055 = vsub.f32 1.0, %v1043
    %1057 = vrot.lane.b32.xlu0 %v1054, 96
    %v1058 = vpop.permute.xlu0 %1057
    %v1060 = vmul.f32 %v1055, %v1058
    %v1061 = vmul.f32 %v1043, %v855
    %v1062 = vadd.f32 %v1060, %v1061
    %1064 = vrot.lane.b32.xlu0 %v1062, 96
    %v1065 = vpop.permute.xlu0 %1064
    %v1067 = vsel %vm128, %v1065, %v958
    %v1069 = vsel %vm239, %v1067, 0
    %1071 = vmatprep.subr.mxu0 0.0
    %1072 = vmatpush1.msra.mxu0 %v94
    %1073 = vmatprep.subr.mxu0 0.0
    %1074 = vmatpush1.msra.mxu0 %v95
    %1075 = vmatprep.subr.mxu0 0.0
    %1076 = vmatpush1.msra.mxu0 %v96
    %1077 = vmatprep.subr.mxu0 0.0
    %1078 = vmatpush1.msra.mxu0 %v97
    %1079 = vmatprep.subr.mxu0 0.0
    %1080 = vmatpush1.msra.mxu0 %v98
    %1081 = vmatprep.subr.mxu0 0.0
    %1082 = vmatpush1.msra.mxu0 %v99
    %1083 = vmatprep.subr.mxu0 0.0
    %1084 = vmatpush1.msra.mxu0 %v100
    %1085 = vmatprep.subr.mxu0 0.0
    %1086 = vmatpush1.msra.mxu0 %v101
    %1087 = vmatprep.subr.mxu0 0.0
    %1088 = vmatpush1.msra.mxu0 0.0
    %1089 = vmatprep.subr.mxu0 0.0
    %1090 = vmatpush1.msra.mxu0 0.0
    %1091 = vmatprep.subr.mxu0 0.0
    %1092 = vmatpush1.msra.mxu0 0.0
    %1093 = vmatprep.subr.mxu0 0.0
    %1094 = vmatpush1.msra.mxu0 0.0
    %1095 = vmatprep.subr.mxu0 0.0
    %1096 = vmatpush1.msra.mxu0 0.0
    %1097 = vmatprep.subr.mxu0 0.0
    %1098 = vmatpush1.msra.mxu0 0.0
    %1099 = vmatprep.subr.mxu0 0.0
    %1100 = vmatpush1.msra.mxu0 0.0
    %1101 = vmatprep.subr.mxu0 0.0
    %1102 = vmatpush1.msra.mxu0 0.0
    %1103 = vmatprep.subr.mxu0 0.0
    %1104 = vmatpush1.msra.mxu0 0.0
    %1105 = vmatprep.subr.mxu0 0.0
    %1106 = vmatpush1.msra.mxu0 0.0
    %1107 = vmatprep.subr.mxu0 0.0
    %1108 = vmatpush1.msra.mxu0 0.0
    %1109 = vmatprep.subr.mxu0 0.0
    %1110 = vmatpush1.msra.mxu0 0.0
    %1111 = vmatprep.subr.mxu0 0.0
    %1112 = vmatpush1.msra.mxu0 0.0
    %1113 = vmatprep.subr.mxu0 0.0
    %1114 = vmatpush1.msra.mxu0 0.0
    %1115 = vmatprep.subr.mxu0 0.0
    %1116 = vmatpush1.msra.mxu0 0.0
    %1117 = vmatprep.subr.mxu0 0.0
    %1118 = vmatpush1.msra.mxu0 0.0
    %1119 = vmatprep.subr.mxu0 0.0
    %1120 = vmatpush1.msra.mxu0 0.0
    %1121 = vmatprep.subr.mxu0 0.0
    %1122 = vmatpush1.msra.mxu0 0.0
    %1123 = vmatprep.subr.mxu0 0.0
    %1124 = vmatpush1.msra.mxu0 0.0
    %1125 = vmatprep.subr.mxu0 0.0
    %1126 = vmatpush1.msra.mxu0 0.0
    %1127 = vmatprep.subr.mxu0 0.0
    %1128 = vmatpush1.msra.mxu0 0.0
    %1129 = vmatprep.subr.mxu0 0.0
    %1130 = vmatpush1.msra.mxu0 0.0
    %1131 = vmatprep.subr.mxu0 0.0
    %1132 = vmatpush1.msra.mxu0 0.0
    %1133 = vmatprep.subr.mxu0 0.0
    %1134 = vmatpush1.msra.mxu0 0.0
    %1135 = vmatprep.mubr.f32.mxu0 0.0
    %1136 = vmatmul.mubr.f32.gmra.mrb[0].mxu0 %v1069
    %v1137 = vpop.f32.mrb[0].mxu0
    %v1138 = vadd.f32 %v237, %v1137
    %v1139 = vpop.f32.mrb[0].mxu0
    %1140 = vdwg.mxu0
    %v1141 = vxor.u32 %v1138, 2147483648
    %v1142 = vmul.f32 %v1141, 1.442695
    %v1143 = vpow.pop %v1142
    %v1144 = vadd.f32 %v1143, 1.0
    %v1145 = vrcp.pop %v1144
    %v1146 = vmul.f32 1.0, %v1145
    %1148 = vrot.lane.b32.xlu0 %v1138, 32
    %v1149 = vpop.permute.xlu0 %1148
    %v1151 = vmul.f32 %v1146, %v1149
    %1153 = vrot.lane.b32.xlu0 %v1151, 64
    %v1154 = vpop.permute.xlu0 %1153
    %v1156 = vadd.f32 %v1138, %v1154
    %v1157 = vtanh.pop %v1156
    %v1158 = vsub.f32 1.0, %v1146
    %1160 = vrot.lane.b32.xlu0 %v1157, 96
    %v1161 = vpop.permute.xlu0 %1160
    %v1163 = vmul.f32 %v1158, %v1161
    %v1164 = vmul.f32 %v1146, %v958
    %v1165 = vadd.f32 %v1163, %v1164
    %1166 = vset.pattern.permute.xlu0 5
    %1167 = vperm.xlu0 %1166, %v86
    %v1168 = vpop.permute.xlu0 %1167
    %v1170 = vmul.f32 %v1168, %v112
    %v1171 = vadd.f32 %v1170, %v119
    %v1172 = vsel %vm128, %v1065, 0
    %1174 = vmatprep.subr.mxu0 0.0
    %1175 = vmatpush1.msra.mxu0 %v89
    %1176 = vmatprep.subr.mxu0 0.0
    %1177 = vmatpush1.msra.mxu0 %v90
    %1178 = vmatprep.subr.mxu0 0.0
    %1179 = vmatpush1.msra.mxu0 %v91
    %1180 = vmatprep.subr.mxu0 0.0
    %1181 = vmatpush1.msra.mxu0 %v92
    %1182 = vmatprep.subr.mxu0 0.0
    %1183 = vmatpush1.msra.mxu0 0.0
    %1184 = vmatprep.subr.mxu0 0.0
    %1185 = vmatpush1.msra.mxu0 0.0
    %1186 = vmatprep.subr.mxu0 0.0
    %1187 = vmatpush1.msra.mxu0 0.0
    %1188 = vmatprep.subr.mxu0 0.0
    %1189 = vmatpush1.msra.mxu0 0.0
    %1190 = vmatprep.subr.mxu0 0.0
    %1191 = vmatpush1.msra.mxu0 0.0
    %1192 = vmatprep.subr.mxu0 0.0
    %1193 = vmatpush1.msra.mxu0 0.0
    %1194 = vmatprep.subr.mxu0 0.0
    %1195 = vmatpush1.msra.mxu0 0.0
    %1196 = vmatprep.subr.mxu0 0.0
    %1197 = vmatpush1.msra.mxu0 0.0
    %1198 = vmatprep.subr.mxu0 0.0
    %1199 = vmatpush1.msra.mxu0 0.0
    %1200 = vmatprep.subr.mxu0 0.0
    %1201 = vmatpush1.msra.mxu0 0.0
    %1202 = vmatprep.subr.mxu0 0.0
    %1203 = vmatpush1.msra.mxu0 0.0
    %1204 = vmatprep.subr.mxu0 0.0
    %1205 = vmatpush1.msra.mxu0 0.0
    %1206 = vmatprep.subr.mxu0 0.0
    %1207 = vmatpush1.msra.mxu0 0.0
    %1208 = vmatprep.subr.mxu0 0.0
    %1209 = vmatpush1.msra.mxu0 0.0
    %1210 = vmatprep.subr.mxu0 0.0
    %1211 = vmatpush1.msra.mxu0 0.0
    %1212 = vmatprep.subr.mxu0 0.0
    %1213 = vmatpush1.msra.mxu0 0.0
    %1214 = vmatprep.subr.mxu0 0.0
    %1215 = vmatpush1.msra.mxu0 0.0
    %1216 = vmatprep.subr.mxu0 0.0
    %1217 = vmatpush1.msra.mxu0 0.0
    %1218 = vmatprep.subr.mxu0 0.0
    %1219 = vmatpush1.msra.mxu0 0.0
    %1220 = vmatprep.subr.mxu0 0.0
    %1221 = vmatpush1.msra.mxu0 0.0
    %1222 = vmatprep.subr.mxu0 0.0
    %1223 = vmatpush1.msra.mxu0 0.0
    %1224 = vmatprep.subr.mxu0 0.0
    %1225 = vmatpush1.msra.mxu0 0.0
    %1226 = vmatprep.subr.mxu0 0.0
    %1227 = vmatpush1.msra.mxu0 0.0
    %1228 = vmatprep.subr.mxu0 0.0
    %1229 = vmatpush1.msra.mxu0 0.0
    %1230 = vmatprep.subr.mxu0 0.0
    %1231 = vmatpush1.msra.mxu0 0.0
    %1232 = vmatprep.subr.mxu0 0.0
    %1233 = vmatpush1.msra.mxu0 0.0
    %1234 = vmatprep.subr.mxu0 0.0
    %1235 = vmatpush1.msra.mxu0 0.0
    %1236 = vmatprep.subr.mxu0 0.0
    %1237 = vmatpush1.msra.mxu0 0.0
    %1238 = vmatprep.mubr.f32.mxu0 0.0
    %1239 = vmatmul.mubr.f32.gmra.mrb[0].mxu0 %v1172
    %v1240 = vpop.f32.mrb[0].mxu0
    %v1241 = vadd.f32 %v126, %v1240
    %v1242 = vpop.f32.mrb[0].mxu0
    %1243 = vdwg.mxu0
    %v1244 = vadd.f32 %v1171, %v1241
    %v1245 = vxor.u32 %v1244, 2147483648
    %v1246 = vmul.f32 %v1245, 1.442695
    %v1247 = vpow.pop %v1246
    %v1248 = vadd.f32 %v1247, 1.0
    %v1249 = vrcp.pop %v1248
    %v1250 = vmul.f32 1.0, %v1249
    %1252 = vrot.lane.b32.xlu0 %v1241, 64
    %v1253 = vpop.permute.xlu0 %1252
    %v1255 = vmul.f32 %v1250, %v1253
    %1257 = vrot.lane.b32.xlu0 %v1255, 64
    %v1258 = vpop.permute.xlu0 %1257
    %v1260 = vadd.f32 %v1171, %v1258
    %v1261 = vtanh.pop %v1260
    %v1262 = vsub.f32 1.0, %v1250
    %1264 = vrot.lane.b32.xlu0 %v1261, 96
    %v1265 = vpop.permute.xlu0 %1264
    %v1267 = vmul.f32 %v1262, %v1265
    %v1268 = vmul.f32 %v1250, %v1062
    %v1269 = vadd.f32 %v1267, %v1268
    %1271 = vrot.lane.b32.xlu0 %v1269, 96
    %v1272 = vpop.permute.xlu0 %1271
    %v1274 = vsel %vm128, %v1272, %v1165
    %v1276 = vsel %vm239, %v1274, 0
    %1278 = vmatprep.subr.mxu0 0.0
    %1279 = vmatpush1.msra.mxu0 %v94
    %1280 = vmatprep.subr.mxu0 0.0
    %1281 = vmatpush1.msra.mxu0 %v95
    %1282 = vmatprep.subr.mxu0 0.0
    %1283 = vmatpush1.msra.mxu0 %v96
    %1284 = vmatprep.subr.mxu0 0.0
    %1285 = vmatpush1.msra.mxu0 %v97
    %1286 = vmatprep.subr.mxu0 0.0
    %1287 = vmatpush1.msra.mxu0 %v98
    %1288 = vmatprep.subr.mxu0 0.0
    %1289 = vmatpush1.msra.mxu0 %v99
    %1290 = vmatprep.subr.mxu0 0.0
    %1291 = vmatpush1.msra.mxu0 %v100
    %1292 = vmatprep.subr.mxu0 0.0
    %1293 = vmatpush1.msra.mxu0 %v101
    %1294 = vmatprep.subr.mxu0 0.0
    %1295 = vmatpush1.msra.mxu0 0.0
    %1296 = vmatprep.subr.mxu0 0.0
    %1297 = vmatpush1.msra.mxu0 0.0
    %1298 = vmatprep.subr.mxu0 0.0
    %1299 = vmatpush1.msra.mxu0 0.0
    %1300 = vmatprep.subr.mxu0 0.0
    %1301 = vmatpush1.msra.mxu0 0.0
    %1302 = vmatprep.subr.mxu0 0.0
    %1303 = vmatpush1.msra.mxu0 0.0
    %1304 = vmatprep.subr.mxu0 0.0
    %1305 = vmatpush1.msra.mxu0 0.0
    %1306 = vmatprep.subr.mxu0 0.0
    %1307 = vmatpush1.msra.mxu0 0.0
    %1308 = vmatprep.subr.mxu0 0.0
    %1309 = vmatpush1.msra.mxu0 0.0
    %1310 = vmatprep.subr.mxu0 0.0
    %1311 = vmatpush1.msra.mxu0 0.0
    %1312 = vmatprep.subr.mxu0 0.0
    %1313 = vmatpush1.msra.mxu0 0.0
    %1314 = vmatprep.subr.mxu0 0.0
    %1315 = vmatpush1.msra.mxu0 0.0
    %1316 = vmatprep.subr.mxu0 0.0
    %1317 = vmatpush1.msra.mxu0 0.0
    %1318 = vmatprep.subr.mxu0 0.0
    %1319 = vmatpush1.msra.mxu0 0.0
    %1320 = vmatprep.subr.mxu0 0.0
    %1321 = vmatpush1.msra.mxu0 0.0
    %1322 = vmatprep.subr.mxu0 0.0
    %1323 = vmatpush1.msra.mxu0 0.0
    %1324 = vmatprep.subr.mxu0 0.0
    %1325 = vmatpush1.msra.mxu0 0.0
    %1326 = vmatprep.subr.mxu0 0.0
    %1327 = vmatpush1.msra.mxu0 0.0
    %1328 = vmatprep.subr.mxu0 0.0
    %1329 = vmatpush1.msra.mxu0 0.0
    %1330 = vmatprep.subr.mxu0 0.0
    %1331 = vmatpush1.msra.mxu0 0.0
    %1332 = vmatprep.subr.mxu0 0.0
    %1333 = vmatpush1.msra.mxu0 0.0
    %1334 = vmatprep.subr.mxu0 0.0
    %1335 = vmatpush1.msra.mxu0 0.0
    %1336 = vmatprep.subr.mxu0 0.0
    %1337 = vmatpush1.msra.mxu0 0.0
    %1338 = vmatprep.subr.mxu0 0.0
    %1339 = vmatpush1.msra.mxu0 0.0
    %1340 = vmatprep.subr.mxu0 0.0
    %1341 = vmatpush1.msra.mxu0 0.0
    %1342 = vmatprep.mubr.f32.mxu0 0.0
    %1343 = vmatmul.mubr.f32.gmra.mrb[0].mxu0 %v1276
    %v1344 = vpop.f32.mrb[0].mxu0
    %v1345 = vadd.f32 %v237, %v1344
    %v1346 = vpop.f32.mrb[0].mxu0
    %1347 = vdwg.mxu0
    %v1348 = vxor.u32 %v1345, 2147483648
    %v1349 = vmul.f32 %v1348, 1.442695
    %v1350 = vpow.pop %v1349
    %v1351 = vadd.f32 %v1350, 1.0
    %v1352 = vrcp.pop %v1351
    %v1353 = vmul.f32 1.0, %v1352
    %1355 = vrot.lane.b32.xlu0 %v1345, 32
    %v1356 = vpop.permute.xlu0 %1355
    %v1358 = vmul.f32 %v1353, %v1356
    %1360 = vrot.lane.b32.xlu0 %v1358, 64
    %v1361 = vpop.permute.xlu0 %1360
    %v1363 = vadd.f32 %v1345, %v1361
    %v1364 = vtanh.pop %v1363
    %v1365 = vsub.f32 1.0, %v1353
    %1367 = vrot.lane.b32.xlu0 %v1364, 96
    %v1368 = vpop.permute.xlu0 %1367
    %v1370 = vmul.f32 %v1365, %v1368
    %v1371 = vmul.f32 %v1353, %v1165
    %v1372 = vadd.f32 %v1370, %v1371
    %1373 = vset.pattern.permute.xlu0 6
    %1374 = vperm.xlu0 %1373, %v86
    %v1375 = vpop.permute.xlu0 %1374
    %v1377 = vmul.f32 %v1375, %v112
    %v1378 = vadd.f32 %v1377, %v119
    %v1379 = vsel %vm128, %v1272, 0
    %1381 = vmatprep.subr.mxu0 0.0
    %1382 = vmatpush1.msra.mxu0 %v89
    %1383 = vmatprep.subr.mxu0 0.0
    %1384 = vmatpush1.msra.mxu0 %v90
    %1385 = vmatprep.subr.mxu0 0.0
    %1386 = vmatpush1.msra.mxu0 %v91
    %1387 = vmatprep.subr.mxu0 0.0
    %1388 = vmatpush1.msra.mxu0 %v92
    %1389 = vmatprep.subr.mxu0 0.0
    %1390 = vmatpush1.msra.mxu0 0.0
    %1391 = vmatprep.subr.mxu0 0.0
    %1392 = vmatpush1.msra.mxu0 0.0
    %1393 = vmatprep.subr.mxu0 0.0
    %1394 = vmatpush1.msra.mxu0 0.0
    %1395 = vmatprep.subr.mxu0 0.0
    %1396 = vmatpush1.msra.mxu0 0.0
    %1397 = vmatprep.subr.mxu0 0.0
    %1398 = vmatpush1.msra.mxu0 0.0
    %1399 = vmatprep.subr.mxu0 0.0
    %1400 = vmatpush1.msra.mxu0 0.0
    %1401 = vmatprep.subr.mxu0 0.0
    %1402 = vmatpush1.msra.mxu0 0.0
    %1403 = vmatprep.subr.mxu0 0.0
    %1404 = vmatpush1.msra.mxu0 0.0
    %1405 = vmatprep.subr.mxu0 0.0
    %1406 = vmatpush1.msra.mxu0 0.0
    %1407 = vmatprep.subr.mxu0 0.0
    %1408 = vmatpush1.msra.mxu0 0.0
    %1409 = vmatprep.subr.mxu0 0.0
    %1410 = vmatpush1.msra.mxu0 0.0
    %1411 = vmatprep.subr.mxu0 0.0
    %1412 = vmatpush1.msra.mxu0 0.0
    %1413 = vmatprep.subr.mxu0 0.0
    %1414 = vmatpush1.msra.mxu0 0.0
    %1415 = vmatprep.subr.mxu0 0.0
    %1416 = vmatpush1.msra.mxu0 0.0
    %1417 = vmatprep.subr.mxu0 0.0
    %1418 = vmatpush1.msra.mxu0 0.0
    %1419 = vmatprep.subr.mxu0 0.0
    %1420 = vmatpush1.msra.mxu0 0.0
    %1421 = vmatprep.subr.mxu0 0.0
    %1422 = vmatpush1.msra.mxu0 0.0
    %1423 = vmatprep.subr.mxu0 0.0
    %1424 = vmatpush1.msra.mxu0 0.0
    %1425 = vmatprep.subr.mxu0 0.0
    %1426 = vmatpush1.msra.mxu0 0.0
    %1427 = vmatprep.subr.mxu0 0.0
    %1428 = vmatpush1.msra.mxu0 0.0
    %1429 = vmatprep.subr.mxu0 0.0
    %1430 = vmatpush1.msra.mxu0 0.0
    %1431 = vmatprep.subr.mxu0 0.0
    %1432 = vmatpush1.msra.mxu0 0.0
    %1433 = vmatprep.subr.mxu0 0.0
    %1434 = vmatpush1.msra.mxu0 0.0
    %1435 = vmatprep.subr.mxu0 0.0
    %1436 = vmatpush1.msra.mxu0 0.0
    %1437 = vmatprep.subr.mxu0 0.0
    %1438 = vmatpush1.msra.mxu0 0.0
    %1439 = vmatprep.subr.mxu0 0.0
    %1440 = vmatpush1.msra.mxu0 0.0
    %1441 = vmatprep.subr.mxu0 0.0
    %1442 = vmatpush1.msra.mxu0 0.0
    %1443 = vmatprep.subr.mxu0 0.0
    %1444 = vmatpush1.msra.mxu0 0.0
    %1445 = vmatprep.mubr.f32.mxu0 0.0
    %1446 = vmatmul.mubr.f32.gmra.mrb[0].mxu0 %v1379
    %v1447 = vpop.f32.mrb[0].mxu0
    %v1448 = vadd.f32 %v126, %v1447
    %v1449 = vpop.f32.mrb[0].mxu0
    %1450 = vdwg.mxu0
    %v1451 = vadd.f32 %v1378, %v1448
    %v1452 = vxor.u32 %v1451, 2147483648
    %v1453 = vmul.f32 %v1452, 1.442695
    %v1454 = vpow.pop %v1453
    %v1455 = vadd.f32 %v1454, 1.0
    %v1456 = vrcp.pop %v1455
    %v1457 = vmul.f32 1.0, %v1456
    %1459 = vrot.lane.b32.xlu0 %v1448, 64
    %v1460 = vpop.permute.xlu0 %1459
    %v1462 = vmul.f32 %v1457, %v1460
    %1464 = vrot.lane.b32.xlu0 %v1462, 64
    %v1465 = vpop.permute.xlu0 %1464
    %v1467 = vadd.f32 %v1378, %v1465
    %v1468 = vtanh.pop %v1467
    %v1469 = vsub.f32 1.0, %v1457
    %1471 = vrot.lane.b32.xlu0 %v1468, 96
    %v1472 = vpop.permute.xlu0 %1471
    %v1474 = vmul.f32 %v1469, %v1472
    %v1475 = vmul.f32 %v1457, %v1269
    %v1476 = vadd.f32 %v1474, %v1475
    %1478 = vrot.lane.b32.xlu0 %v1476, 96
    %v1479 = vpop.permute.xlu0 %1478
    %v1481 = vsel %vm128, %v1479, %v1372
    %v1483 = vsel %vm239, %v1481, 0
    %1485 = vmatprep.subr.mxu0 0.0
    %1486 = vmatpush1.msra.mxu0 %v94
    %1487 = vmatprep.subr.mxu0 0.0
    %1488 = vmatpush1.msra.mxu0 %v95
    %1489 = vmatprep.subr.mxu0 0.0
    %1490 = vmatpush1.msra.mxu0 %v96
    %1491 = vmatprep.subr.mxu0 0.0
    %1492 = vmatpush1.msra.mxu0 %v97
    %1493 = vmatprep.subr.mxu0 0.0
    %1494 = vmatpush1.msra.mxu0 %v98
    %1495 = vmatprep.subr.mxu0 0.0
    %1496 = vmatpush1.msra.mxu0 %v99
    %1497 = vmatprep.subr.mxu0 0.0
    %1498 = vmatpush1.msra.mxu0 %v100
    %1499 = vmatprep.subr.mxu0 0.0
    %1500 = vmatpush1.msra.mxu0 %v101
    %1501 = vmatprep.subr.mxu0 0.0
    %1502 = vmatpush1.msra.mxu0 0.0
    %1503 = vmatprep.subr.mxu0 0.0
    %1504 = vmatpush1.msra.mxu0 0.0
    %1505 = vmatprep.subr.mxu0 0.0
    %1506 = vmatpush1.msra.mxu0 0.0
    %1507 = vmatprep.subr.mxu0 0.0
    %1508 = vmatpush1.msra.mxu0 0.0
    %1509 = vmatprep.subr.mxu0 0.0
    %1510 = vmatpush1.msra.mxu0 0.0
    %1511 = vmatprep.subr.mxu0 0.0
    %1512 = vmatpush1.msra.mxu0 0.0
    %1513 = vmatprep.subr.mxu0 0.0
    %1514 = vmatpush1.msra.mxu0 0.0
    %1515 = vmatprep.subr.mxu0 0.0
    %1516 = vmatpush1.msra.mxu0 0.0
    %1517 = vmatprep.subr.mxu0 0.0
    %1518 = vmatpush1.msra.mxu0 0.0
    %1519 = vmatprep.subr.mxu0 0.0
    %1520 = vmatpush1.msra.mxu0 0.0
    %1521 = vmatprep.subr.mxu0 0.0
    %1522 = vmatpush1.msra.mxu0 0.0
    %1523 = vmatprep.subr.mxu0 0.0
    %1524 = vmatpush1.msra.mxu0 0.0
    %1525 = vmatprep.subr.mxu0 0.0
    %1526 = vmatpush1.msra.mxu0 0.0
    %1527 = vmatprep.subr.mxu0 0.0
    %1528 = vmatpush1.msra.mxu0 0.0
    %1529 = vmatprep.subr.mxu0 0.0
    %1530 = vmatpush1.msra.mxu0 0.0
    %1531 = vmatprep.subr.mxu0 0.0
    %1532 = vmatpush1.msra.mxu0 0.0
    %1533 = vmatprep.subr.mxu0 0.0
    %1534 = vmatpush1.msra.mxu0 0.0
    %1535 = vmatprep.subr.mxu0 0.0
    %1536 = vmatpush1.msra.mxu0 0.0
    %1537 = vmatprep.subr.mxu0 0.0
    %1538 = vmatpush1.msra.mxu0 0.0
    %1539 = vmatprep.subr.mxu0 0.0
    %1540 = vmatpush1.msra.mxu0 0.0
    %1541 = vmatprep.subr.mxu0 0.0
    %1542 = vmatpush1.msra.mxu0 0.0
    %1543 = vmatprep.subr.mxu0 0.0
    %1544 = vmatpush1.msra.mxu0 0.0
    %1545 = vmatprep.subr.mxu0 0.0
    %1546 = vmatpush1.msra.mxu0 0.0
    %1547 = vmatprep.subr.mxu0 0.0
    %1548 = vmatpush1.msra.mxu0 0.0
    %1549 = vmatprep.mubr.f32.mxu0 0.0
    %1550 = vmatmul.mubr.f32.gmra.mrb[0].mxu0 %v1483
    %v1551 = vpop.f32.mrb[0].mxu0
    %v1552 = vadd.f32 %v237, %v1551
    %v1553 = vpop.f32.mrb[0].mxu0
    %1554 = vdwg.mxu0
    %v1555 = vxor.u32 %v1552, 2147483648
    %v1556 = vmul.f32 %v1555, 1.442695
    %v1557 = vpow.pop %v1556
    %v1558 = vadd.f32 %v1557, 1.0
    %v1559 = vrcp.pop %v1558
    %v1560 = vmul.f32 1.0, %v1559
    %1562 = vrot.lane.b32.xlu0 %v1552, 32
    %v1563 = vpop.permute.xlu0 %1562
    %v1565 = vmul.f32 %v1560, %v1563
    %1567 = vrot.lane.b32.xlu0 %v1565, 64
    %v1568 = vpop.permute.xlu0 %1567
    %v1570 = vadd.f32 %v1552, %v1568
    %v1571 = vtanh.pop %v1570
    %v1572 = vsub.f32 1.0, %v1560
    %1574 = vrot.lane.b32.xlu0 %v1571, 96
    %v1575 = vpop.permute.xlu0 %1574
    %v1577 = vmul.f32 %v1572, %v1575
    %v1578 = vmul.f32 %v1560, %v1372
    %v1579 = vadd.f32 %v1577, %v1578
    %1580 = vset.pattern.permute.xlu0 7
    %1581 = vperm.xlu0 %1580, %v86
    %v1582 = vpop.permute.xlu0 %1581
    %v1584 = vmul.f32 %v1582, %v112
    %v1585 = vadd.f32 %v1584, %v119
    %v1586 = vsel %vm128, %v1479, 0
    %1588 = vmatprep.subr.mxu0 0.0
    %1589 = vmatpush1.msra.mxu0 %v89
    %1590 = vmatprep.subr.mxu0 0.0
    %1591 = vmatpush1.msra.mxu0 %v90
    %1592 = vmatprep.subr.mxu0 0.0
    %1593 = vmatpush1.msra.mxu0 %v91
    %1594 = vmatprep.subr.mxu0 0.0
    %1595 = vmatpush1.msra.mxu0 %v92
    %1596 = vmatprep.subr.mxu0 0.0
    %1597 = vmatpush1.msra.mxu0 0.0
    %1598 = vmatprep.subr.mxu0 0.0
    %1599 = vmatpush1.msra.mxu0 0.0
    %1600 = vmatprep.subr.mxu0 0.0
    %1601 = vmatpush1.msra.mxu0 0.0
    %1602 = vmatprep.subr.mxu0 0.0
    %1603 = vmatpush1.msra.mxu0 0.0
    %1604 = vmatprep.subr.mxu0 0.0
    %1605 = vmatpush1.msra.mxu0 0.0
    %1606 = vmatprep.subr.mxu0 0.0
    %1607 = vmatpush1.msra.mxu0 0.0
    %1608 = vmatprep.subr.mxu0 0.0
    %1609 = vmatpush1.msra.mxu0 0.0
    %1610 = vmatprep.subr.mxu0 0.0
    %1611 = vmatpush1.msra.mxu0 0.0
    %1612 = vmatprep.subr.mxu0 0.0
    %1613 = vmatpush1.msra.mxu0 0.0
    %1614 = vmatprep.subr.mxu0 0.0
    %1615 = vmatpush1.msra.mxu0 0.0
    %1616 = vmatprep.subr.mxu0 0.0
    %1617 = vmatpush1.msra.mxu0 0.0
    %1618 = vmatprep.subr.mxu0 0.0
    %1619 = vmatpush1.msra.mxu0 0.0
    %1620 = vmatprep.subr.mxu0 0.0
    %1621 = vmatpush1.msra.mxu0 0.0
    %1622 = vmatprep.subr.mxu0 0.0
    %1623 = vmatpush1.msra.mxu0 0.0
    %1624 = vmatprep.subr.mxu0 0.0
    %1625 = vmatpush1.msra.mxu0 0.0
    %1626 = vmatprep.subr.mxu0 0.0
    %1627 = vmatpush1.msra.mxu0 0.0
    %1628 = vmatprep.subr.mxu0 0.0
    %1629 = vmatpush1.msra.mxu0 0.0
    %1630 = vmatprep.subr.mxu0 0.0
    %1631 = vmatpush1.msra.mxu0 0.0
    %1632 = vmatprep.subr.mxu0 0.0
    %1633 = vmatpush1.msra.mxu0 0.0
    %1634 = vmatprep.subr.mxu0 0.0
    %1635 = vmatpush1.msra.mxu0 0.0
    %1636 = vmatprep.subr.mxu0 0.0
    %1637 = vmatpush1.msra.mxu0 0.0
    %1638 = vmatprep.subr.mxu0 0.0
    %1639 = vmatpush1.msra.mxu0 0.0
    %1640 = vmatprep.subr.mxu0 0.0
    %1641 = vmatpush1.msra.mxu0 0.0
    %1642 = vmatprep.subr.mxu0 0.0
    %1643 = vmatpush1.msra.mxu0 0.0
    %1644 = vmatprep.subr.mxu0 0.0
    %1645 = vmatpush1.msra.mxu0 0.0
    %1646 = vmatprep.subr.mxu0 0.0
    %1647 = vmatpush1.msra.mxu0 0.0
    %1648 = vmatprep.subr.mxu0 0.0
    %1649 = vmatpush1.msra.mxu0 0.0
    %1650 = vmatprep.subr.mxu0 0.0
    %1651 = vmatpush1.msra.mxu0 0.0
    %1652 = vmatprep.mubr.f32.mxu0 0.0
    %1653 = vmatmul.mubr.f32.gmra.mrb[0].mxu0 %v1586
    %v1654 = vpop.f32.mrb[0].mxu0
    %v1655 = vadd.f32 %v126, %v1654
    %v1656 = vpop.f32.mrb[0].mxu0
    %1657 = vdwg.mxu0
    %v1658 = vadd.f32 %v1585, %v1655
    %v1659 = vxor.u32 %v1658, 2147483648
    %v1660 = vmul.f32 %v1659, 1.442695
    %v1661 = vpow.pop %v1660
    %v1662 = vadd.f32 %v1661, 1.0
    %v1663 = vrcp.pop %v1662
    %v1664 = vmul.f32 1.0, %v1663
    %1666 = vrot.lane.b32.xlu0 %v1655, 64
    %v1667 = vpop.permute.xlu0 %1666
    %v1669 = vmul.f32 %v1664, %v1667
    %1671 = vrot.lane.b32.xlu0 %v1669, 64
    %v1672 = vpop.permute.xlu0 %1671
    %v1674 = vadd.f32 %v1585, %v1672
    %v1675 = vtanh.pop %v1674
    %v1676 = vsub.f32 1.0, %v1664
    %1678 = vrot.lane.b32.xlu0 %v1675, 96
    %v1679 = vpop.permute.xlu0 %1678
    %v1681 = vmul.f32 %v1676, %v1679
    %v1682 = vmul.f32 %v1664, %v1476
    %v1683 = vadd.f32 %v1681, %v1682
    %1685 = vrot.lane.b32.xlu0 %v1683, 96
    %v1686 = vpop.permute.xlu0 %1685
    %v1688 = vsel %vm128, %v1686, %v1579
    %v1690 = vsel %vm239, %v1688, 0
    %1692 = vmatprep.subr.mxu0 0.0
    %1693 = vmatpush1.msra.mxu0 %v94
    %1694 = vmatprep.subr.mxu0 0.0
    %1695 = vmatpush1.msra.mxu0 %v95
    %1696 = vmatprep.subr.mxu0 0.0
    %1697 = vmatpush1.msra.mxu0 %v96
    %1698 = vmatprep.subr.mxu0 0.0
    %1699 = vmatpush1.msra.mxu0 %v97
    %1700 = vmatprep.subr.mxu0 0.0
    %1701 = vmatpush1.msra.mxu0 %v98
    %1702 = vmatprep.subr.mxu0 0.0
    %1703 = vmatpush1.msra.mxu0 %v99
    %1704 = vmatprep.subr.mxu0 0.0
    %1705 = vmatpush1.msra.mxu0 %v100
    %1706 = vmatprep.subr.mxu0 0.0
    %1707 = vmatpush1.msra.mxu0 %v101
    %1708 = vmatprep.subr.mxu0 0.0
    %1709 = vmatpush1.msra.mxu0 0.0
    %1710 = vmatprep.subr.mxu0 0.0
    %1711 = vmatpush1.msra.mxu0 0.0
    %1712 = vmatprep.subr.mxu0 0.0
    %1713 = vmatpush1.msra.mxu0 0.0
    %1714 = vmatprep.subr.mxu0 0.0
    %1715 = vmatpush1.msra.mxu0 0.0
    %1716 = vmatprep.subr.mxu0 0.0
    %1717 = vmatpush1.msra.mxu0 0.0
    %1718 = vmatprep.subr.mxu0 0.0
    %1719 = vmatpush1.msra.mxu0 0.0
    %1720 = vmatprep.subr.mxu0 0.0
    %1721 = vmatpush1.msra.mxu0 0.0
    %1722 = vmatprep.subr.mxu0 0.0
    %1723 = vmatpush1.msra.mxu0 0.0
    %1724 = vmatprep.subr.mxu0 0.0
    %1725 = vmatpush1.msra.mxu0 0.0
    %1726 = vmatprep.subr.mxu0 0.0
    %1727 = vmatpush1.msra.mxu0 0.0
    %1728 = vmatprep.subr.mxu0 0.0
    %1729 = vmatpush1.msra.mxu0 0.0
    %1730 = vmatprep.subr.mxu0 0.0
    %1731 = vmatpush1.msra.mxu0 0.0
    %1732 = vmatprep.subr.mxu0 0.0
    %1733 = vmatpush1.msra.mxu0 0.0
    %1734 = vmatprep.subr.mxu0 0.0
    %1735 = vmatpush1.msra.mxu0 0.0
    %1736 = vmatprep.subr.mxu0 0.0
    %1737 = vmatpush1.msra.mxu0 0.0
    %1738 = vmatprep.subr.mxu0 0.0
    %1739 = vmatpush1.msra.mxu0 0.0
    %1740 = vmatprep.subr.mxu0 0.0
    %1741 = vmatpush1.msra.mxu0 0.0
    %1742 = vmatprep.subr.mxu0 0.0
    %1743 = vmatpush1.msra.mxu0 0.0
    %1744 = vmatprep.subr.mxu0 0.0
    %1745 = vmatpush1.msra.mxu0 0.0
    %1746 = vmatprep.subr.mxu0 0.0
    %1747 = vmatpush1.msra.mxu0 0.0
    %1748 = vmatprep.subr.mxu0 0.0
    %1749 = vmatpush1.msra.mxu0 0.0
    %1750 = vmatprep.subr.mxu0 0.0
    %1751 = vmatpush1.msra.mxu0 0.0
    %1752 = vmatprep.subr.mxu0 0.0
    %1753 = vmatpush1.msra.mxu0 0.0
    %1754 = vmatprep.subr.mxu0 0.0
    %1755 = vmatpush1.msra.mxu0 0.0
    %1756 = vmatprep.mubr.f32.mxu0 0.0
    %1757 = vmatmul.mubr.f32.gmra.mrb[0].mxu0 %v1690
    %v1758 = vpop.f32.mrb[0].mxu0
    %v1759 = vadd.f32 %v237, %v1758
    %v1760 = vpop.f32.mrb[0].mxu0
    %1761 = vdwg.mxu0
    %v1762 = vxor.u32 %v1759, 2147483648
    %v1763 = vmul.f32 %v1762, 1.442695
    %v1764 = vpow.pop %v1763
    %v1765 = vadd.f32 %v1764, 1.0
    %v1766 = vrcp.pop %v1765
    %v1767 = vmul.f32 1.0, %v1766
    %1769 = vrot.lane.b32.xlu0 %v1759, 32
    %v1770 = vpop.permute.xlu0 %1769
    %v1772 = vmul.f32 %v1767, %v1770
    %1774 = vrot.lane.b32.xlu0 %v1772, 64
    %v1775 = vpop.permute.xlu0 %1774
    %v1777 = vadd.f32 %v1759, %v1775
    %v1778 = vtanh.pop %v1777
    %v1779 = vsub.f32 1.0, %v1767
    %1781 = vrot.lane.b32.xlu0 %v1778, 96
    %v1782 = vpop.permute.xlu0 %1781
    %v1784 = vmul.f32 %v1779, %v1782
    %v1785 = vmul.f32 %v1767, %v1579
    %v1786 = vadd.f32 %v1784, %v1785
    %v1787 = vld [vmem:[#allocation8] sm:$0xff]
    %v1788 = vld [vmem:[#allocation8 + $0x8] sm:$0xff]
    %v1789 = vld [vmem:[#allocation8 + $0x10] sm:$0xff]
    %v1790 = vld [vmem:[#allocation8 + $0x18] sm:$0xff]
    %v1791 = vld [vmem:[%s8] sm:$0x1]
    %v1793 = vlaneseq
    %v1794 = vshrl.u32 %v1793, 7
    %v1795 = vsub.s32 0, %v1794
    %v1796 = vrot.slane %v1791, %v1795
    %1799 = vrot.lane.b32.xlu0 %v1786, 96
    %v1800 = vpop.permute.xlu0 %1799
    %v1801 = vsel %vm128, %v1800, 0
    %1803 = vmatprep.subr.mxu0 0.0
    %1804 = vmatpush1.msra.mxu0 %v1787
    %1805 = vmatprep.subr.mxu0 0.0
    %1806 = vmatpush1.msra.mxu0 %v1788
    %1807 = vmatprep.subr.mxu0 0.0
    %1808 = vmatpush1.msra.mxu0 %v1789
    %1809 = vmatprep.subr.mxu0 0.0
    %1810 = vmatpush1.msra.mxu0 %v1790
    %1811 = vmatprep.subr.mxu0 0.0
    %1812 = vmatpush1.msra.mxu0 0.0
    %1813 = vmatprep.subr.mxu0 0.0
    %1814 = vmatpush1.msra.mxu0 0.0
    %1815 = vmatprep.subr.mxu0 0.0
    %1816 = vmatpush1.msra.mxu0 0.0
    %1817 = vmatprep.subr.mxu0 0.0
    %1818 = vmatpush1.msra.mxu0 0.0
    %1819 = vmatprep.subr.mxu0 0.0
    %1820 = vmatpush1.msra.mxu0 0.0
    %1821 = vmatprep.subr.mxu0 0.0
    %1822 = vmatpush1.msra.mxu0 0.0
    %1823 = vmatprep.subr.mxu0 0.0
    %1824 = vmatpush1.msra.mxu0 0.0
    %1825 = vmatprep.subr.mxu0 0.0
    %1826 = vmatpush1.msra.mxu0 0.0
    %1827 = vmatprep.subr.mxu0 0.0
    %1828 = vmatpush1.msra.mxu0 0.0
    %1829 = vmatprep.subr.mxu0 0.0
    %1830 = vmatpush1.msra.mxu0 0.0
    %1831 = vmatprep.subr.mxu0 0.0
    %1832 = vmatpush1.msra.mxu0 0.0
    %1833 = vmatprep.subr.mxu0 0.0
    %1834 = vmatpush1.msra.mxu0 0.0
    %1835 = vmatprep.subr.mxu0 0.0
    %1836 = vmatpush1.msra.mxu0 0.0
    %1837 = vmatprep.subr.mxu0 0.0
    %1838 = vmatpush1.msra.mxu0 0.0
    %1839 = vmatprep.subr.mxu0 0.0
    %1840 = vmatpush1.msra.mxu0 0.0
    %1841 = vmatprep.subr.mxu0 0.0
    %1842 = vmatpush1.msra.mxu0 0.0
    %1843 = vmatprep.subr.mxu0 0.0
    %1844 = vmatpush1.msra.mxu0 0.0
    %1845 = vmatprep.subr.mxu0 0.0
    %1846 = vmatpush1.msra.mxu0 0.0
    %1847 = vmatprep.subr.mxu0 0.0
    %1848 = vmatpush1.msra.mxu0 0.0
    %1849 = vmatprep.subr.mxu0 0.0
    %1850 = vmatpush1.msra.mxu0 0.0
    %1851 = vmatprep.subr.mxu0 0.0
    %1852 = vmatpush1.msra.mxu0 0.0
    %1853 = vmatprep.subr.mxu0 0.0
    %1854 = vmatpush1.msra.mxu0 0.0
    %1855 = vmatprep.subr.mxu0 0.0
    %1856 = vmatpush1.msra.mxu0 0.0
    %1857 = vmatprep.subr.mxu0 0.0
    %1858 = vmatpush1.msra.mxu0 0.0
    %1859 = vmatprep.subr.mxu0 0.0
    %1860 = vmatpush1.msra.mxu0 0.0
    %1861 = vmatprep.subr.mxu0 0.0
    %1862 = vmatpush1.msra.mxu0 0.0
    %1863 = vmatprep.subr.mxu0 0.0
    %1864 = vmatpush1.msra.mxu0 0.0
    %1865 = vmatprep.subr.mxu0 0.0
    %1866 = vmatpush1.msra.mxu0 0.0
    %1867 = vmatprep.mubr.f32.mxu0 0.0
    %1868 = vmatmul.mubr.f32.gmra.mrb[0].mxu0 %v1801
    %v1869 = vpop.f32.mrb[0].mxu0
    %v1870 = vadd.f32 %v1796, %v1869
    %v1871 = vpop.f32.mrb[0].mxu0
    %1872 = vdwg.mxu0
    %v1873 = vtanh.pop %v1870
    %1874 = vst [vmem:[#allocation10] sm:$0x3] %v1873
    // Predicated region
    $region54: #{tpu_custom_call.1} parent=1 // pred_check
      _
    $region55: #{tpu_custom_call.1} parent=1 // pred_check_branch
      %1876 = sbr.rel (0) target = $region57
    $region56: #{tpu_custom_call.1} parent=1 // pred_region
      %s1878 = ssub.s32 32, 32
      %1879 = vsyncadd [#allocation4], %s1878
      %s1881 = sshll.u32 [#allocation10], 4
      %s1882 = int_to_ptr.vmem [resolvable:$true] %s1881
      %1884 = dma.vmem_to_hbm [thread:$0]  %s1882, 32, %s9, [#allocation4]
    $region57: #{tpu_custom_call.1} parent=1 // pred_fallthru
      _
    // Predicated region
    $region58: #{tpu_custom_call.1} parent=1 // pred_check
      _
    $region59: #{tpu_custom_call.1} parent=1 // pred_check_branch
      %1886 = sbr.rel (0) target = $region61
    $region60: #{tpu_custom_call.1} parent=1 // pred_region
      %1887 = dma.done [#allocation4], 32
    $region61: #{tpu_custom_call.1} parent=1 // pred_fallthru
      _
    %1888 = vsyncpa [#allocation3], 1
    %1889 = vsyncpa [#allocation6], 1
    %1890 = vsyncpa [#allocation9], 1
    %1891 = vsyncpa [#allocation4], 1

</llo_original>
